<compile_context>
chip_gen: v5e
topology: v5e:2x2
jax: 0.10.0
libtpu: 0.0.40
codegen_flags: <defaults>
</compile_context>

<pallas_src>
import jax
import jax.numpy as jnp
from jax.experimental import pallas as pl
from jax.experimental.pallas import tpu as pltpu

L_SEQ = 16        # sequence length (must be even for MaxPool1d(2))
C_IN = 2          # input channels (Conv1d(2, 16, ...))
K1 = 5            # first conv kernel size
B_BLK_MAX = 256   # batch elements per grid step (temporaries ~few MiB at 256)

# Row offsets of each layer inside the packed (W_ROWS, 128) bf16 weight slab.
# All offsets / extents are multiples of 16 -> bf16-sublane-tile aligned slices.
W1_OFF, W1_ROWS = 0, 16      # Conv1d(2, 16, 5): K*Cin = 10, padded to 16 rows
W2_OFF, W2_ROWS = 16, 48     # Conv1d(16, 32, 3): K*Cin = 48, Cout = 32
W3_OFF, W3_ROWS = 64, 96     # Conv1d(32, 64, 3): K*Cin = 96, Cout = 64
W4_OFF, W4_ROWS = 160, 192   # Conv1d(64, 64, 3): K*Cin = 192, Cout = 64
WFC_OFF, WFC_ROWS = 352, 64  # Linear(64, 2) (padded to 128 output lanes)
W_ROWS = 416


def _round_up(v, m):
    return (v + m - 1) // m * m


def cnn_kernel(x_ref, w_ref, b_ref, out_ref, mp_ref, pool_ref):
    nrows = x_ref.shape[0]              # b_blk * 16 (batch folded into sublanes)
    half = nrows // 2                   # b_blk * 8  (pooled grid)
    b_blk = nrows // L_SEQ

    b_all = b_ref[...]                  # (8, 128) f32 packed biases

    # Row-position masks, built ONCE per grid step and reused by every layer.
    pos_f = jax.lax.broadcasted_iota(jnp.int32, (nrows, 1), 0) % L_SEQ
    m_f_m1 = pos_f >= 1                 # delta = -1 valid, full-length grid
    m_f_p1 = pos_f <= L_SEQ - 2         # delta = +1 valid, full-length grid
    pos_h = jax.lax.broadcasted_iota(jnp.int32, (half, 1), 0) % (L_SEQ // 2)
    m_h_m1 = pos_h >= 1                 # delta = -1 valid, pooled grid
    m_h_p1 = pos_h <= (L_SEQ // 2) - 2  # delta = +1 valid, pooled grid

    def shift_rows(v, delta, mask):
        # v[i + delta] along the (batch, position) sublane axis; rows whose
        # target falls outside the element's window are zeroed by `mask`
        # (pltpu.roll wrap-around only touches exactly those masked rows).
        n = v.shape[0]
        rolled = pltpu.roll(v, shift=(-delta) % n, axis=0)
        return jnp.where(mask, rolled, 0.0)

    def conv3_relu(v, w, b, m_minus, m_plus):
        # 'same' K=3 conv as ONE im2col matmul (bf16 operands, f32 accumulate).
        im = jnp.concatenate(
            [shift_rows(v, -1, m_minus), v, shift_rows(v, 1, m_plus)], axis=1)
        y = jnp.dot(im.astype(jnp.bfloat16), w,
                    preferred_element_type=jnp.float32) + b
        return jnp.maximum(y, 0.0)

    # Conv1d(2,16,5,p=2) + ReLU: im2col was done in the wrapper -> one matmul.
    x = x_ref[...]                      # (nrows, 16) bf16, lanes 10..15 are zero
    h = jnp.maximum(
        jnp.dot(x, w_ref[W1_OFF:W1_OFF + W1_ROWS, 0:16],
                preferred_element_type=jnp.float32) + b_all[0:1, 0:16], 0.0)

    # Conv1d(16,32,3,p=1) + ReLU on the full-length grid.
    h = conv3_relu(h, w_ref[W2_OFF:W2_OFF + W2_ROWS, 0:32],
                   b_all[1:2, 0:32], m_f_m1, m_f_p1)

    # MaxPool1d(2): pairwise max (valid at even positions), then compact the
    # sequence by reading back only the even rows (stride-2 sublane read).
    h = jnp.maximum(h, shift_rows(h, 1, m_f_p1))
    mp_ref[...] = h
    h = mp_ref[pl.ds(0, half, stride=2), :]          # (b_blk*8, 32)

    # Conv1d(32,64,3,p=1)+ReLU, Conv1d(64,64,3,p=1)+ReLU on the pooled grid.
    h = conv3_relu(h, w_ref[W3_OFF:W3_OFF + W3_ROWS, 0:64],
                   b_all[2:3, 0:64], m_h_m1, m_h_p1)
    h = conv3_relu(h, w_ref[W4_OFF:W4_OFF + W4_ROWS, 0:64],
                   b_all[3:4, 0:64], m_h_m1, m_h_p1)

    # AdaptiveAvgPool1d(1) + Flatten: roll-tree sum of the 8 positions of each
    # element (row 8*b accumulates rows 8*b .. 8*b+7 only, so the wrap-around
    # of the global rolls never contaminates the rows we read), then pick every
    # 8th row via a strided sublane read and scale by 1/8.
    s = h + pltpu.roll(h, shift=half - 1, axis=0)
    s = s + pltpu.roll(s, shift=half - 2, axis=0)
    s = s + pltpu.roll(s, shift=half - 4, axis=0)
    pool_ref[...] = s
    pooled = pool_ref[pl.ds(0, b_blk, stride=8), :] * jnp.float32(0.125)

    # TODO(synk): Dropout(0.3) is identity here (eval/inference mode only).
    # Linear(64, 2) with the weight padded to 128 lanes -> lane-dense store.
    out_ref[...] = (
        jnp.dot(pooled.astype(jnp.bfloat16),
                w_ref[WFC_OFF:WFC_OFF + WFC_ROWS, :],
                preferred_element_type=jnp.float32) + b_all[4:5, :])


def init_params(key):
    """Deterministic synthetic parameters (shapes match the nn.Module)."""
    ks = jax.random.split(key, 10)

    def rnd(k, shape, scale):
        return scale * jax.random.normal(k, shape, dtype=jnp.float32)

    w1 = rnd(ks[0], (5, C_IN, 16), 0.30)   # Conv1d(2, 16, 5), stored (K, Cin, Cout)
    b1 = rnd(ks[1], (16,), 0.10)
    w2 = rnd(ks[2], (3, 16, 32), 0.15)     # Conv1d(16, 32, 3)
    b2 = rnd(ks[3], (32,), 0.10)
    w3 = rnd(ks[4], (3, 32, 64), 0.10)     # Conv1d(32, 64, 3)
    b3 = rnd(ks[5], (64,), 0.10)
    w4 = rnd(ks[6], (3, 64, 64), 0.08)     # Conv1d(64, 64, 3)
    b4 = rnd(ks[7], (64,), 0.10)
    wfc = rnd(ks[8], (64, 2), 0.12)        # Linear(64, 2), pre-transposed
    bfc = rnd(ks[9], (2,), 0.10)
    return (w1, b1, w2, b2, w3, b3, w4, b4, wfc, bfc)


def pack_params(params):
    """Pack all weights into one bf16 (416,128) slab and biases into f32 (8,128)."""
    w1, b1, w2, b2, w3, b3, w4, b4, wfc, bfc = params
    wpack = jnp.zeros((W_ROWS, 128), jnp.float32)

    def put_conv(wp, w, row0):
        k, cin, cout = w.shape
        return wp.at[row0:row0 + k * cin, 0:cout].set(w.reshape(k * cin, cout))

    wpack = put_conv(wpack, w1, W1_OFF)
    wpack = put_conv(wpack, w2, W2_OFF)
    wpack = put_conv(wpack, w3, W3_OFF)
    wpack = put_conv(wpack, w4, W4_OFF)
    wpack = wpack.at[WFC_OFF:WFC_OFF + 64, 0:2].set(wfc)
    wpack = wpack.astype(jnp.bfloat16)

    bpack = jnp.zeros((8, 128), jnp.float32)
    bpack = bpack.at[0, 0:16].set(b1)
    bpack = bpack.at[1, 0:32].set(b2)
    bpack = bpack.at[2, 0:64].set(b3)
    bpack = bpack.at[3, 0:64].set(b4)
    bpack = bpack.at[4, 0:2].set(bfc)
    return wpack, bpack


@jax.jit
def cnn_forward(x_ncl, wpack, bpack):
    n, c, l = x_ncl.shape
    assert c == C_IN and l == L_SEQ

    # Batch block: aim for >= 2 grid steps when the batch allows, so the
    # "parallel" axis can shard across v7x's two TensorCores.
    if n > 8:
        b_blk = min(B_BLK_MAX, _round_up((n + 1) // 2, 8))
    else:
        b_blk = 8
    n_pad = _round_up(n, b_blk)

    # Conv-1 im2col in the wrapper: (N, C, L) -> (N, L, K*Cin), pad lanes to
    # 16 and the batch to n_pad, cast to bf16, fold batch into sublanes.
    x = x_ncl.astype(jnp.float32)
    xp = jnp.pad(x, ((0, 0), (0, 0), (2, 2)))                 # (N, 2, L+4)
    taps = [xp[:, :, k:k + L_SEQ] for k in range(K1)]         # tap k <-> offset k-2
    im = jnp.transpose(jnp.stack(taps, axis=1), (0, 3, 1, 2)) # (N, L, K, Cin)
    im = im.reshape(n, L_SEQ, K1 * C_IN)
    im = jnp.pad(im, ((0, n_pad - n), (0, 0), (0, 16 - K1 * C_IN)))
    im = im.astype(jnp.bfloat16).reshape(n_pad * L_SEQ, 16)

    out = pl.pallas_call(
        cnn_kernel,
        out_shape=jax.ShapeDtypeStruct((n_pad, 128), jnp.float32),
        grid=(n_pad // b_blk,),
        in_specs=[
            pl.BlockSpec((b_blk * L_SEQ, 16), lambda i: (i, 0)),   # im2col input
            pl.BlockSpec((W_ROWS, 128), lambda i: (0, 0)),         # packed weights
            pl.BlockSpec((8, 128), lambda i: (0, 0)),              # packed biases
        ],
        out_specs=pl.BlockSpec((b_blk, 128), lambda i: (i, 0)),
        scratch_shapes=[
            pltpu.VMEM((b_blk * L_SEQ, 32), jnp.float32),          # MaxPool compaction
            pltpu.VMEM((b_blk * (L_SEQ // 2), 64), jnp.float32),   # pooled-row extraction
        ],
        compiler_params=pltpu.CompilerParams(
            dimension_semantics=("parallel",)),
    )(im, wpack, bpack)
    return out[:n, :2]                                             # (N, 2) logits


def reference_forward(x_ncl, params):
    """Pure-JAX f32 reference mirroring the PyTorch Sequential (eval mode)."""
    w1, b1, w2, b2, w3, b3, w4, b4, wfc, bfc = params

    def conv(x, w, b):
        wt = jnp.transpose(w, (2, 1, 0))   # (K, Cin, Cout) -> (Cout, Cin, K)
        y = jax.lax.conv_general_dilated(
            x, wt, window_strides=(1,), padding="SAME",
            dimension_numbers=("NCH", "OIH", "NCH"))
        return y + b[None, :, None]

    h = jax.nn.relu(conv(x_ncl, w1, b1))
    h = jax.nn.relu(conv(h, w2, b2))
    n, c, l = h.shape
    h = jnp.max(h.reshape(n, c, l // 2, 2), axis=-1)   # MaxPool1d(2)
    h = jax.nn.relu(conv(h, w3, b3))
    h = jax.nn.relu(conv(h, w4, b4))
    h = jnp.mean(h, axis=-1)                           # AdaptiveAvgPool1d(1)+Flatten
    return h @ wfc + bfc                               # Dropout = identity (eval)


if __name__ == "__main__":
    key = jax.random.PRNGKey(0)
    pkey, xkey, xkey2 = jax.random.split(key, 3)
    params = init_params(pkey)
    wpack, bpack = pack_params(params)

    # Primary check: small batch (N=2, C=2, L=16).
    x = jax.random.normal(xkey, (2, C_IN, L_SEQ), dtype=jnp.float32)
    out = jax.block_until_ready(cnn_forward(x, wpack, bpack))
    assert out.shape == (2, 2), out.shape
    ref = reference_forward(x, params)
    if not jnp.allclose(out, ref, atol=3e-2, rtol=3e-2):
        raise AssertionError(f"kernel/reference mismatch:\n{out}\nvs\n{ref}")

    # Secondary check: multi-step grid + batch padding path.
    x2 = jax.random.normal(xkey2, (24, C_IN, L_SEQ), dtype=jnp.float32)
    out2 = jax.block_until_ready(cnn_forward(x2, wpack, bpack))
    ref2 = reference_forward(x2, params)
    if not jnp.allclose(out2, ref2, atol=3e-2, rtol=3e-2):
        raise AssertionError("kernel/reference mismatch on batched run")

    print("KERNEL_OK")
</pallas_src>

<mosaic_0001>
module attributes {stable_mosaic.version = 11 : i64} {
  func.func @cnn_kernel(%arg0: i32, %arg1: memref<128x16xbf16, #tpu.memory_space<vmem>>, %arg2: memref<416x128xbf16, #tpu.memory_space<vmem>>, %arg3: memref<8x128xf32, #tpu.memory_space<vmem>>, %arg4: memref<8x128xf32, #tpu.memory_space<vmem>>, %arg5: memref<128x32xf32, #tpu.memory_space<vmem>>, %arg6: memref<64x64xf32, #tpu.memory_space<vmem>>) attributes {dimension_semantics = [#tpu.dimension_semantics<parallel>], iteration_bounds = array<i64: 1>, scalar_prefetch = 0 : i64, scratch_operands = 2 : i64, tpu.core_type = #tpu.core_type<tc>, window_params = [{transform_indices = @transform_0, window_bounds = array<i64: 128, 16>}, {pipeline_mode = #tpu.pipeline_mode<synchronous>, transform_indices = @transform_1, window_bounds = array<i64: 416, 128>}, {pipeline_mode = #tpu.pipeline_mode<synchronous>, transform_indices = @transform_2, window_bounds = array<i64: 8, 128>}, {transform_indices = @transform_3, window_bounds = array<i64: 8, 128>}]} {
    %c0 = arith.constant 0 : index
    %c0_0 = arith.constant 0 : index
    %0 = vector.load %arg3[%c0, %c0_0] : memref<8x128xf32, #tpu.memory_space<vmem>>, vector<8x128xf32>
    %1 = tpu.iota {dimensions = array<i32: 0>} : vector<128x1xi32>
    %c16_i32 = arith.constant 16 : i32
    %c0_i32 = arith.constant 0 : i32
    %2 = arith.cmpi eq, %c16_i32, %c0_i32 : i32
    %c1_i32 = arith.constant 1 : i32
    %3 = arith.select %2, %c1_i32, %c16_i32 : i32
    %4 = vector.broadcast %3 : i32 to vector<128x1xi32>
    %5 = arith.remsi %1, %4 : vector<128x1xi32>
    %c0_i32_1 = arith.constant 0 : i32
    %6 = vector.broadcast %c0_i32_1 : i32 to vector<128x1xi32>
    %7 = arith.cmpi ne, %5, %6 : vector<128x1xi32>
    %c0_i32_2 = arith.constant 0 : i32
    %8 = vector.broadcast %c0_i32_2 : i32 to vector<128x1xi32>
    %9 = arith.cmpi slt, %5, %8 : vector<128x1xi32>
    %c0_i32_3 = arith.constant 0 : i32
    %10 = arith.cmpi slt, %3, %c0_i32_3 : i32
    %11 = vector.broadcast %10 : i1 to vector<128x1xi1>
    %12 = vector.broadcast %11 : vector<128x1xi1> to vector<128x1xi1>
    %13 = arith.xori %9, %12 : vector<128x1xi1>
    %14 = arith.andi %13, %7 : vector<128x1xi1>
    %15 = vector.broadcast %3 : i32 to vector<128x1xi32>
    %16 = arith.addi %5, %15 : vector<128x1xi32>
    %17 = arith.select %14, %16, %5 : vector<128x1xi1>, vector<128x1xi32>
    %c1_i32_4 = arith.constant 1 : i32
    %18 = vector.broadcast %c1_i32_4 : i32 to vector<128x1xi32>
    %19 = arith.cmpi sge, %17, %18 : vector<128x1xi32>
    %c14_i32 = arith.constant 14 : i32
    %20 = vector.broadcast %c14_i32 : i32 to vector<128x1xi32>
    %21 = arith.cmpi sle, %17, %20 : vector<128x1xi32>
    %22 = tpu.iota {dimensions = array<i32: 0>} : vector<64x1xi32>
    %c8_i32 = arith.constant 8 : i32
    %c0_i32_5 = arith.constant 0 : i32
    %23 = arith.cmpi eq, %c8_i32, %c0_i32_5 : i32
    %c1_i32_6 = arith.constant 1 : i32
    %24 = arith.select %23, %c1_i32_6, %c8_i32 : i32
    %25 = vector.broadcast %24 : i32 to vector<64x1xi32>
    %26 = arith.remsi %22, %25 : vector<64x1xi32>
    %c0_i32_7 = arith.constant 0 : i32
    %27 = vector.broadcast %c0_i32_7 : i32 to vector<64x1xi32>
    %28 = arith.cmpi ne, %26, %27 : vector<64x1xi32>
    %c0_i32_8 = arith.constant 0 : i32
    %29 = vector.broadcast %c0_i32_8 : i32 to vector<64x1xi32>
    %30 = arith.cmpi slt, %26, %29 : vector<64x1xi32>
    %c0_i32_9 = arith.constant 0 : i32
    %31 = arith.cmpi slt, %24, %c0_i32_9 : i32
    %32 = vector.broadcast %31 : i1 to vector<64x1xi1>
    %33 = vector.broadcast %32 : vector<64x1xi1> to vector<64x1xi1>
    %34 = arith.xori %30, %33 : vector<64x1xi1>
    %35 = arith.andi %34, %28 : vector<64x1xi1>
    %36 = vector.broadcast %24 : i32 to vector<64x1xi32>
    %37 = arith.addi %26, %36 : vector<64x1xi32>
    %38 = arith.select %35, %37, %26 : vector<64x1xi1>, vector<64x1xi32>
    %c1_i32_10 = arith.constant 1 : i32
    %39 = vector.broadcast %c1_i32_10 : i32 to vector<64x1xi32>
    %40 = arith.cmpi sge, %38, %39 : vector<64x1xi32>
    %c6_i32 = arith.constant 6 : i32
    %41 = vector.broadcast %c6_i32 : i32 to vector<64x1xi32>
    %42 = arith.cmpi sle, %38, %41 : vector<64x1xi32>
    %c0_11 = arith.constant 0 : index
    %c0_12 = arith.constant 0 : index
    %43 = vector.load %arg1[%c0_11, %c0_12] : memref<128x16xbf16, #tpu.memory_space<vmem>>, vector<128x16xbf16>
    %c0_13 = arith.constant 0 : index
    %c0_14 = arith.constant 0 : index
    %44 = vector.load %arg2[%c0_13, %c0_14] : memref<416x128xbf16, #tpu.memory_space<vmem>>, vector<16x16xbf16>
    %cst = arith.constant dense<0.000000e+00> : vector<128x16xf32>
    %45 = tpu.matmul %43, %44, %cst {dimension_numbers = #tpu.dot_dimension_numbers<[1], [0], [0], [1], [0, 0, 1, 1], [], []>} : vector<128x16xbf16>, vector<16x16xbf16>, vector<128x16xf32> -> vector<128x16xf32>
    %46 = vector.extract_strided_slice %0 {offsets = [0, 0], sizes = [1, 16], strides = [1, 1]} : vector<8x128xf32> to vector<1x16xf32>
    %47 = vector.broadcast %46 : vector<1x16xf32> to vector<128x16xf32>
    %48 = arith.addf %45, %47 : vector<128x16xf32>
    %cst_15 = arith.constant 0.000000e+00 : f32
    %49 = vector.broadcast %cst_15 : f32 to vector<128x16xf32>
    %50 = arith.maximumf %48, %49 : vector<128x16xf32>
    %c16 = arith.constant 16 : index
    %c0_16 = arith.constant 0 : index
    %51 = vector.load %arg2[%c16, %c0_16] : memref<416x128xbf16, #tpu.memory_space<vmem>>, vector<48x32xbf16>
    %52 = vector.extract_strided_slice %0 {offsets = [1, 0], sizes = [1, 32], strides = [1, 1]} : vector<8x128xf32> to vector<1x32xf32>
    %c1_i32_17 = arith.constant 1 : i32
    %53 = tpu.dynamic_rotate %50 by %c1_i32_17 dim 0 : vector<128x16xf32>, i32 -> vector<128x16xf32>
    %cst_18 = arith.constant 0.000000e+00 : f32
    %54 = vector.shape_cast %19 : vector<128x1xi1> to vector<128x1xi1>
    %55 = vector.broadcast %54 : vector<128x1xi1> to vector<128x16xi1>
    %56 = vector.broadcast %cst_18 : f32 to vector<128x16xf32>
    %57 = arith.select %55, %53, %56 : vector<128x16xi1>, vector<128x16xf32>
    %c127_i32 = arith.constant 127 : i32
    %58 = tpu.dynamic_rotate %50 by %c127_i32 dim 0 : vector<128x16xf32>, i32 -> vector<128x16xf32>
    %cst_19 = arith.constant 0.000000e+00 : f32
    %59 = vector.shape_cast %21 : vector<128x1xi1> to vector<128x1xi1>
    %60 = vector.broadcast %59 : vector<128x1xi1> to vector<128x16xi1>
    %61 = vector.broadcast %cst_19 : f32 to vector<128x16xf32>
    %62 = arith.select %60, %58, %61 : vector<128x16xi1>, vector<128x16xf32>
    %63 = tpu.concatenate %57, %50, %62 in 1 : vector<128x16xf32>, vector<128x16xf32>, vector<128x16xf32> -> vector<128x48xf32>
    %64 = arith.truncf %63 : vector<128x48xf32> to vector<128x48xbf16>
    %cst_20 = arith.constant dense<0.000000e+00> : vector<128x32xf32>
    %65 = tpu.matmul %64, %51, %cst_20 {dimension_numbers = #tpu.dot_dimension_numbers<[1], [0], [0], [1], [0, 0, 1, 1], [], []>} : vector<128x48xbf16>, vector<48x32xbf16>, vector<128x32xf32> -> vector<128x32xf32>
    %66 = vector.broadcast %52 : vector<1x32xf32> to vector<128x32xf32>
    %67 = arith.addf %65, %66 : vector<128x32xf32>
    %cst_21 = arith.constant 0.000000e+00 : f32
    %68 = vector.broadcast %cst_21 : f32 to vector<128x32xf32>
    %69 = arith.maximumf %67, %68 : vector<128x32xf32>
    %c127_i32_22 = arith.constant 127 : i32
    %70 = tpu.dynamic_rotate %69 by %c127_i32_22 dim 0 : vector<128x32xf32>, i32 -> vector<128x32xf32>
    %cst_23 = arith.constant 0.000000e+00 : f32
    %71 = vector.shape_cast %21 : vector<128x1xi1> to vector<128x1xi1>
    %72 = vector.broadcast %71 : vector<128x1xi1> to vector<128x32xi1>
    %73 = vector.broadcast %cst_23 : f32 to vector<128x32xf32>
    %74 = arith.select %72, %70, %73 : vector<128x32xi1>, vector<128x32xf32>
    %75 = arith.maximumf %69, %74 : vector<128x32xf32>
    %c0_24 = arith.constant 0 : index
    %c0_25 = arith.constant 0 : index
    %76 = vector.load %arg5[%c0_24, %c0_25] : memref<128x32xf32, #tpu.memory_space<vmem>>, vector<128x32xf32>
    tpu.vector_store %arg5[%c0_24, %c0_25], %75 {strides = array<i32>} : memref<128x32xf32, #tpu.memory_space<vmem>>, vector<128x32xf32>,
    %c0_26 = arith.constant 0 : index
    %c0_27 = arith.constant 0 : index
    %77 = tpu.strided_load %arg5[%c0_26, %c0_27] {strides = array<i32: 2, 1>} : memref<128x32xf32, #tpu.memory_space<vmem>>, vector<64x32xf32>
    %c64 = arith.constant 64 : index
    %c0_28 = arith.constant 0 : index
    %78 = vector.load %arg2[%c64, %c0_28] : memref<416x128xbf16, #tpu.memory_space<vmem>>, vector<96x64xbf16>
    %79 = vector.extract_strided_slice %0 {offsets = [2, 0], sizes = [1, 64], strides = [1, 1]} : vector<8x128xf32> to vector<1x64xf32>
    %c1_i32_29 = arith.constant 1 : i32
    %80 = tpu.dynamic_rotate %77 by %c1_i32_29 dim 0 : vector<64x32xf32>, i32 -> vector<64x32xf32>
    %cst_30 = arith.constant 0.000000e+00 : f32
    %81 = vector.shape_cast %40 : vector<64x1xi1> to vector<64x1xi1>
    %82 = vector.broadcast %81 : vector<64x1xi1> to vector<64x32xi1>
    %83 = vector.broadcast %cst_30 : f32 to vector<64x32xf32>
    %84 = arith.select %82, %80, %83 : vector<64x32xi1>, vector<64x32xf32>
    %c63_i32 = arith.constant 63 : i32
    %85 = tpu.dynamic_rotate %77 by %c63_i32 dim 0 : vector<64x32xf32>, i32 -> vector<64x32xf32>
    %cst_31 = arith.constant 0.000000e+00 : f32
    %86 = vector.shape_cast %42 : vector<64x1xi1> to vector<64x1xi1>
    %87 = vector.broadcast %86 : vector<64x1xi1> to vector<64x32xi1>
    %88 = vector.broadcast %cst_31 : f32 to vector<64x32xf32>
    %89 = arith.select %87, %85, %88 : vector<64x32xi1>, vector<64x32xf32>
    %90 = tpu.concatenate %84, %77, %89 in 1 : vector<64x32xf32>, vector<64x32xf32>, vector<64x32xf32> -> vector<64x96xf32>
    %91 = arith.truncf %90 : vector<64x96xf32> to vector<64x96xbf16>
    %cst_32 = arith.constant dense<0.000000e+00> : vector<64x64xf32>
    %92 = tpu.matmul %91, %78, %cst_32 {dimension_numbers = #tpu.dot_dimension_numbers<[1], [0], [0], [1], [0, 0, 1, 1], [], []>} : vector<64x96xbf16>, vector<96x64xbf16>, vector<64x64xf32> -> vector<64x64xf32>
    %93 = vector.broadcast %79 : vector<1x64xf32> to vector<64x64xf32>
    %94 = arith.addf %92, %93 : vector<64x64xf32>
    %cst_33 = arith.constant 0.000000e+00 : f32
    %95 = vector.broadcast %cst_33 : f32 to vector<64x64xf32>
    %96 = arith.maximumf %94, %95 : vector<64x64xf32>
    %c160 = arith.constant 160 : index
    %c0_34 = arith.constant 0 : index
    %97 = vector.load %arg2[%c160, %c0_34] : memref<416x128xbf16, #tpu.memory_space<vmem>>, vector<192x64xbf16>
    %98 = vector.extract_strided_slice %0 {offsets = [3, 0], sizes = [1, 64], strides = [1, 1]} : vector<8x128xf32> to vector<1x64xf32>
    %c1_i32_35 = arith.constant 1 : i32
    %99 = tpu.dynamic_rotate %96 by %c1_i32_35 dim 0 : vector<64x64xf32>, i32 -> vector<64x64xf32>
    %cst_36 = arith.constant 0.000000e+00 : f32
    %100 = vector.shape_cast %40 : vector<64x1xi1> to vector<64x1xi1>
    %101 = vector.broadcast %100 : vector<64x1xi1> to vector<64x64xi1>
    %102 = vector.broadcast %cst_36 : f32 to vector<64x64xf32>
    %103 = arith.select %101, %99, %102 : vector<64x64xi1>, vector<64x64xf32>
    %c63_i32_37 = arith.constant 63 : i32
    %104 = tpu.dynamic_rotate %96 by %c63_i32_37 dim 0 : vector<64x64xf32>, i32 -> vector<64x64xf32>
    %cst_38 = arith.constant 0.000000e+00 : f32
    %105 = vector.shape_cast %42 : vector<64x1xi1> to vector<64x1xi1>
    %106 = vector.broadcast %105 : vector<64x1xi1> to vector<64x64xi1>
    %107 = vector.broadcast %cst_38 : f32 to vector<64x64xf32>
    %108 = arith.select %106, %104, %107 : vector<64x64xi1>, vector<64x64xf32>
    %109 = tpu.concatenate %103, %96, %108 in 1 : vector<64x64xf32>, vector<64x64xf32>, vector<64x64xf32> -> vector<64x192xf32>
    %110 = arith.truncf %109 : vector<64x192xf32> to vector<64x192xbf16>
    %cst_39 = arith.constant dense<0.000000e+00> : vector<64x64xf32>
    %111 = tpu.matmul %110, %97, %cst_39 {dimension_numbers = #tpu.dot_dimension_numbers<[1], [0], [0], [1], [0, 0, 1, 1], [], []>} : vector<64x192xbf16>, vector<192x64xbf16>, vector<64x64xf32> -> vector<64x64xf32>
    %112 = vector.broadcast %98 : vector<1x64xf32> to vector<64x64xf32>
    %113 = arith.addf %111, %112 : vector<64x64xf32>
    %cst_40 = arith.constant 0.000000e+00 : f32
    %114 = vector.broadcast %cst_40 : f32 to vector<64x64xf32>
    %115 = arith.maximumf %113, %114 : vector<64x64xf32>
    %c63_i32_41 = arith.constant 63 : i32
    %116 = tpu.dynamic_rotate %115 by %c63_i32_41 dim 0 : vector<64x64xf32>, i32 -> vector<64x64xf32>
    %117 = arith.addf %115, %116 : vector<64x64xf32>
    %c62_i32 = arith.constant 62 : i32
    %118 = tpu.dynamic_rotate %117 by %c62_i32 dim 0 : vector<64x64xf32>, i32 -> vector<64x64xf32>
    %119 = arith.addf %117, %118 : vector<64x64xf32>
    %c60_i32 = arith.constant 60 : i32
    %120 = tpu.dynamic_rotate %119 by %c60_i32 dim 0 : vector<64x64xf32>, i32 -> vector<64x64xf32>
    %121 = arith.addf %119, %120 : vector<64x64xf32>
    %c0_42 = arith.constant 0 : index
    %c0_43 = arith.constant 0 : index
    %122 = vector.load %arg6[%c0_42, %c0_43] : memref<64x64xf32, #tpu.memory_space<vmem>>, vector<64x64xf32>
    tpu.vector_store %arg6[%c0_42, %c0_43], %121 {strides = array<i32>} : memref<64x64xf32, #tpu.memory_space<vmem>>, vector<64x64xf32>,
    %c0_44 = arith.constant 0 : index
    %c0_45 = arith.constant 0 : index
    %123 = tpu.strided_load %arg6[%c0_44, %c0_45] {strides = array<i32: 8, 1>} : memref<64x64xf32, #tpu.memory_space<vmem>>, vector<8x64xf32>
    %cst_46 = arith.constant 1.250000e-01 : f32
    %124 = vector.broadcast %cst_46 : f32 to vector<8x64xf32>
    %125 = arith.mulf %123, %124 : vector<8x64xf32>
    %126 = arith.truncf %125 : vector<8x64xf32> to vector<8x64xbf16>
    %c352 = arith.constant 352 : index
    %c0_47 = arith.constant 0 : index
    %127 = vector.load %arg2[%c352, %c0_47] : memref<416x128xbf16, #tpu.memory_space<vmem>>, vector<64x128xbf16>
    %cst_48 = arith.constant dense<0.000000e+00> : vector<8x128xf32>
    %128 = tpu.matmul %126, %127, %cst_48 {dimension_numbers = #tpu.dot_dimension_numbers<[1], [0], [0], [1], [0, 0, 1, 1], [], []>} : vector<8x64xbf16>, vector<64x128xbf16>, vector<8x128xf32> -> vector<8x128xf32>
    %129 = vector.extract_strided_slice %0 {offsets = [4, 0], sizes = [1, 128], strides = [1, 1]} : vector<8x128xf32> to vector<1x128xf32>
    %130 = vector.broadcast %129 : vector<1x128xf32> to vector<8x128xf32>
    %131 = arith.addf %128, %130 : vector<8x128xf32>
    %c0_49 = arith.constant 0 : index
    %c0_50 = arith.constant 0 : index
    %132 = vector.load %arg4[%c0_49, %c0_50] : memref<8x128xf32, #tpu.memory_space<vmem>>, vector<8x128xf32>
    tpu.vector_store %arg4[%c0_49, %c0_50], %131 {strides = array<i32>} : memref<8x128xf32, #tpu.memory_space<vmem>>, vector<8x128xf32>,
    return
  }
  func.func @transform_0(%arg0: i32) -> (i32, i32) {
    %c0_i32 = arith.constant 0 : i32
    %c0_i32_0 = arith.constant 0 : i32
    return %arg0, %c0_i32 : i32, i32
  }
  func.func @transform_1(%arg0: i32) -> (i32, i32) {
    %c0_i32 = arith.constant 0 : i32
    %c0_i32_0 = arith.constant 0 : i32
    %c0_i32_1 = arith.constant 0 : i32
    return %c0_i32, %c0_i32_0 : i32, i32
  }
  func.func @transform_2(%arg0: i32) -> (i32, i32) {
    %c0_i32 = arith.constant 0 : i32
    %c0_i32_0 = arith.constant 0 : i32
    %c0_i32_1 = arith.constant 0 : i32
    return %c0_i32, %c0_i32_0 : i32, i32
  }
  func.func @transform_3(%arg0: i32) -> (i32, i32) {
    %c0_i32 = arith.constant 0 : i32
    %c0_i32_0 = arith.constant 0 : i32
    return %arg0, %c0_i32 : i32, i32
  }
}

</mosaic_0001>

<llo_original>
// kernel: cnn_forward.1
$region0: #{cnn_forward.1}
  #allocation0 [shape = 'u32[]', space=smem, size = 0x4, offset = 0x4, fixed_abs, tag = 'smem constant byte address 0x4 - core index']
  #allocation1 [shape = 'u32[72,128]{1,0:T(1,128)}', space=vmem, size = 0x9000, scoped, tag = 'internal scratch']
  #allocation2 [shape = 'f32[128,32]{1,0:T(8,128)}', space=vmem, size = 0x10000, scoped, tag = 'scratch operand']
  #allocation3 [shape = 'f32[64,64]{1,0:T(8,128)}', space=vmem, size = 0x8000, scoped, tag = 'scratch operand']
  %s0 = inlined_call_operand.vmem [shape: bf16[128,16], index: 0, kind: input, shape index: {}]
  %s1 = inlined_call_operand.hbm [shape: bf16[416,128], index: 1, kind: input, shape index: {}]
  %s2 = inlined_call_operand.vmem [shape: f32[8,128], index: 2, kind: input, shape index: {}]
  %s3 = inlined_call_operand.vmem [shape: f32[8,128], index: 3, kind: output, shape index: {}]
  %s4 = sld [smem:[#allocation0]]
  $region26: #{cnn_forward.1} parent=0
    _
  %s6 = ssub.s32 1, %s4
  %s7 = scalar_select 0, %s6, %s4
  $region1: #{cnn_forward.1} parent=0
    #allocation4 [shape = 'u8[106496]{0}', space=vmem, size = 0x1a000, scoped, tag = 'input window, operand 1, single buffered']
    #allocation5 [shape = 's32[1]{0}', space=sflag, size = 0x4, scoped, tag = 'scoped memory for cnn_forward.1']
    %8 = vsyncpa [#allocation5], 0
    // Predicated region
    $region2: #{cnn_forward.1} parent=1 // pred_check
      _
    $region3: #{cnn_forward.1} parent=1 // pred_check_branch
      %10 = sbr.rel (0) target = $region5
    $region4: #{cnn_forward.1} parent=1 // pred_region
      _
    $region5: #{cnn_forward.1} parent=1 // pred_fallthru
      _
    // Predicated region
    $region6: #{cnn_forward.1} parent=1 // pred_check
      _
    $region7: #{cnn_forward.1} parent=1 // pred_check_branch
      %12 = sbr.rel (0) target = $region9
    $region8: #{cnn_forward.1} parent=1 // pred_region
      %14 = vsyncadd [#allocation5], 0
      %s15 = sshll.u32 %s1, 4
      %s16 = int_to_ptr.hbm [resolvable:$true] %s15
      %s17 = sshll.u32 [#allocation4], 4
      %s18 = int_to_ptr.vmem [resolvable:$true] %s17
      %23 = dma.hbm_to_vmem [thread:$0]  %s16, 3328, %s18, [#allocation5], 64, 64, 4
    $region9: #{cnn_forward.1} parent=1 // pred_fallthru
      _
    // Predicated region
    $region10: #{cnn_forward.1} parent=1 // pred_check
      _
    $region11: #{cnn_forward.1} parent=1 // pred_check_branch
      %25 = sbr.rel (0) target = $region13
    $region12: #{cnn_forward.1} parent=1 // pred_region
      _
    $region13: #{cnn_forward.1} parent=1 // pred_fallthru
      _
    // Predicated region
    $region14: #{cnn_forward.1} parent=1 // pred_check
      _
    $region15: #{cnn_forward.1} parent=1 // pred_check_branch
      %27 = sbr.rel (0) target = $region17
    $region16: #{cnn_forward.1} parent=1 // pred_region
      %29 = dma.done [#allocation5], 3328
    $region17: #{cnn_forward.1} parent=1 // pred_fallthru
      _
    %v31 = vld [vmem:[%s2] sm:$0xff]
    %v32 = vlaneseq
    %v33 = vshrl.u32 %v32, 7
    %v34 = vadd.s32 %v33, 8
    %v35 = vadd.s32 %v33, 16
    %v36 = vadd.s32 %v33, 24
    %v37 = vadd.s32 %v33, 32
    %v38 = vadd.s32 %v33, 40
    %v39 = vadd.s32 %v33, 48
    %v40 = vadd.s32 %v33, 56
    %v41 = vadd.s32 %v33, 64
    %v42 = vadd.s32 %v33, 72
    %v43 = vadd.s32 %v33, 80
    %v44 = vadd.s32 %v33, 88
    %v45 = vadd.s32 %v33, 96
    %v46 = vadd.s32 %v33, 104
    %v47 = vadd.s32 %v33, 112
    %v48 = vadd.s32 %v33, 120
    %vm49 = vcmp.lt.s32.totalorder %v33, 0
    %v50 = vsub.s32 0, %v33
    %v51 = vsel %vm49, %v50, %v33
    %v52 = vshrl.u32 %v51, 4
    %v53 = vand.u32 %v51, 15
    %v54 = vsub.s32 0, %v53
    %v55 = vsel %vm49, %v54, %v53
    %vm56 = vcmp.lt.s32.totalorder %v34, 0
    %v57 = vsub.s32 0, %v34
    %v58 = vsel %vm56, %v57, %v34
    %v59 = vshrl.u32 %v58, 4
    %v60 = vand.u32 %v58, 15
    %v61 = vsub.s32 0, %v60
    %v62 = vsel %vm56, %v61, %v60
    %vm63 = vcmp.lt.s32.totalorder %v35, 0
    %v64 = vsub.s32 0, %v35
    %v65 = vsel %vm63, %v64, %v35
    %v66 = vshrl.u32 %v65, 4
    %v67 = vand.u32 %v65, 15
    %v68 = vsub.s32 0, %v67
    %v69 = vsel %vm63, %v68, %v67
    %vm70 = vcmp.lt.s32.totalorder %v36, 0
    %v71 = vsub.s32 0, %v36
    %v72 = vsel %vm70, %v71, %v36
    %v73 = vshrl.u32 %v72, 4
    %v74 = vand.u32 %v72, 15
    %v75 = vsub.s32 0, %v74
    %v76 = vsel %vm70, %v75, %v74
    %vm77 = vcmp.lt.s32.totalorder %v37, 0
    %v78 = vsub.s32 0, %v37
    %v79 = vsel %vm77, %v78, %v37
    %v80 = vshrl.u32 %v79, 4
    %v81 = vand.u32 %v79, 15
    %v82 = vsub.s32 0, %v81
    %v83 = vsel %vm77, %v82, %v81
    %vm84 = vcmp.lt.s32.totalorder %v38, 0
    %v85 = vsub.s32 0, %v38
    %v86 = vsel %vm84, %v85, %v38
    %v87 = vshrl.u32 %v86, 4
    %v88 = vand.u32 %v86, 15
    %v89 = vsub.s32 0, %v88
    %v90 = vsel %vm84, %v89, %v88
    %vm91 = vcmp.lt.s32.totalorder %v39, 0
    %v92 = vsub.s32 0, %v39
    %v93 = vsel %vm91, %v92, %v39
    %v94 = vshrl.u32 %v93, 4
    %v95 = vand.u32 %v93, 15
    %v96 = vsub.s32 0, %v95
    %v97 = vsel %vm91, %v96, %v95
    %vm98 = vcmp.lt.s32.totalorder %v40, 0
    %v99 = vsub.s32 0, %v40
    %v100 = vsel %vm98, %v99, %v40
    %v101 = vshrl.u32 %v100, 4
    %v102 = vand.u32 %v100, 15
    %v103 = vsub.s32 0, %v102
    %v104 = vsel %vm98, %v103, %v102
    %vm105 = vcmp.lt.s32.totalorder %v41, 0
    %v106 = vsub.s32 0, %v41
    %v107 = vsel %vm105, %v106, %v41
    %v108 = vshrl.u32 %v107, 4
    %v109 = vand.u32 %v107, 15
    %v110 = vsub.s32 0, %v109
    %v111 = vsel %vm105, %v110, %v109
    %vm112 = vcmp.lt.s32.totalorder %v42, 0
    %v113 = vsub.s32 0, %v42
    %v114 = vsel %vm112, %v113, %v42
    %v115 = vshrl.u32 %v114, 4
    %v116 = vand.u32 %v114, 15
    %v117 = vsub.s32 0, %v116
    %v118 = vsel %vm112, %v117, %v116
    %vm119 = vcmp.lt.s32.totalorder %v43, 0
    %v120 = vsub.s32 0, %v43
    %v121 = vsel %vm119, %v120, %v43
    %v122 = vshrl.u32 %v121, 4
    %v123 = vand.u32 %v121, 15
    %v124 = vsub.s32 0, %v123
    %v125 = vsel %vm119, %v124, %v123
    %vm126 = vcmp.lt.s32.totalorder %v44, 0
    %v127 = vsub.s32 0, %v44
    %v128 = vsel %vm126, %v127, %v44
    %v129 = vshrl.u32 %v128, 4
    %v130 = vand.u32 %v128, 15
    %v131 = vsub.s32 0, %v130
    %v132 = vsel %vm126, %v131, %v130
    %vm133 = vcmp.lt.s32.totalorder %v45, 0
    %v134 = vsub.s32 0, %v45
    %v135 = vsel %vm133, %v134, %v45
    %v136 = vshrl.u32 %v135, 4
    %v137 = vand.u32 %v135, 15
    %v138 = vsub.s32 0, %v137
    %v139 = vsel %vm133, %v138, %v137
    %vm140 = vcmp.lt.s32.totalorder %v46, 0
    %v141 = vsub.s32 0, %v46
    %v142 = vsel %vm140, %v141, %v46
    %v143 = vshrl.u32 %v142, 4
    %v144 = vand.u32 %v142, 15
    %v145 = vsub.s32 0, %v144
    %v146 = vsel %vm140, %v145, %v144
    %vm147 = vcmp.lt.s32.totalorder %v47, 0
    %v148 = vsub.s32 0, %v47
    %v149 = vsel %vm147, %v148, %v47
    %v150 = vshrl.u32 %v149, 4
    %v151 = vand.u32 %v149, 15
    %v152 = vsub.s32 0, %v151
    %v153 = vsel %vm147, %v152, %v151
    %vm154 = vcmp.lt.s32.totalorder %v48, 0
    %v155 = vsub.s32 0, %v48
    %v156 = vsel %vm154, %v155, %v48
    %v157 = vshrl.u32 %v156, 4
    %v158 = vand.u32 %v156, 15
    %v159 = vsub.s32 0, %v158
    %v160 = vsel %vm154, %v159, %v158
    %vm161 = vcmp.ne.s32.totalorder %v55, 0
    %vm162 = vcmp.ne.s32.totalorder %v62, 0
    %vm163 = vcmp.ne.s32.totalorder %v69, 0
    %vm164 = vcmp.ne.s32.totalorder %v76, 0
    %vm165 = vcmp.ne.s32.totalorder %v83, 0
    %vm166 = vcmp.ne.s32.totalorder %v90, 0
    %vm167 = vcmp.ne.s32.totalorder %v97, 0
    %vm168 = vcmp.ne.s32.totalorder %v104, 0
    %vm169 = vcmp.ne.s32.totalorder %v111, 0
    %vm170 = vcmp.ne.s32.totalorder %v118, 0
    %vm171 = vcmp.ne.s32.totalorder %v125, 0
    %vm172 = vcmp.ne.s32.totalorder %v132, 0
    %vm173 = vcmp.ne.s32.totalorder %v139, 0
    %vm174 = vcmp.ne.s32.totalorder %v146, 0
    %vm175 = vcmp.ne.s32.totalorder %v153, 0
    %vm176 = vcmp.ne.s32.totalorder %v160, 0
    %vm177 = vcmp.lt.s32.totalorder %v55, 0
    %vm178 = vcmp.lt.s32.totalorder %v62, 0
    %vm179 = vcmp.lt.s32.totalorder %v69, 0
    %vm180 = vcmp.lt.s32.totalorder %v76, 0
    %vm181 = vcmp.lt.s32.totalorder %v83, 0
    %vm182 = vcmp.lt.s32.totalorder %v90, 0
    %vm183 = vcmp.lt.s32.totalorder %v97, 0
    %vm184 = vcmp.lt.s32.totalorder %v104, 0
    %vm185 = vcmp.lt.s32.totalorder %v111, 0
    %vm186 = vcmp.lt.s32.totalorder %v118, 0
    %vm187 = vcmp.lt.s32.totalorder %v125, 0
    %vm188 = vcmp.lt.s32.totalorder %v132, 0
    %vm189 = vcmp.lt.s32.totalorder %v139, 0
    %vm190 = vcmp.lt.s32.totalorder %v146, 0
    %vm191 = vcmp.lt.s32.totalorder %v153, 0
    %vm192 = vcmp.lt.s32.totalorder %v160, 0
    %vm193 = vmand %vm177, %vm161
    %vm194 = vmand %vm178, %vm162
    %vm195 = vmand %vm179, %vm163
    %vm196 = vmand %vm180, %vm164
    %vm197 = vmand %vm181, %vm165
    %vm198 = vmand %vm182, %vm166
    %vm199 = vmand %vm183, %vm167
    %vm200 = vmand %vm184, %vm168
    %vm201 = vmand %vm185, %vm169
    %vm202 = vmand %vm186, %vm170
    %vm203 = vmand %vm187, %vm171
    %vm204 = vmand %vm188, %vm172
    %vm205 = vmand %vm189, %vm173
    %vm206 = vmand %vm190, %vm174
    %vm207 = vmand %vm191, %vm175
    %vm208 = vmand %vm192, %vm176
    %v209 = vadd.s32 %v55, 16
    %v210 = vadd.s32 %v62, 16
    %v211 = vadd.s32 %v69, 16
    %v212 = vadd.s32 %v76, 16
    %v213 = vadd.s32 %v83, 16
    %v214 = vadd.s32 %v90, 16
    %v215 = vadd.s32 %v97, 16
    %v216 = vadd.s32 %v104, 16
    %v217 = vadd.s32 %v111, 16
    %v218 = vadd.s32 %v118, 16
    %v219 = vadd.s32 %v125, 16
    %v220 = vadd.s32 %v132, 16
    %v221 = vadd.s32 %v139, 16
    %v222 = vadd.s32 %v146, 16
    %v223 = vadd.s32 %v153, 16
    %v224 = vadd.s32 %v160, 16
    %v225 = vsel %vm193, %v209, %v55
    %v226 = vsel %vm194, %v210, %v62
    %v227 = vsel %vm195, %v211, %v69
    %v228 = vsel %vm196, %v212, %v76
    %v229 = vsel %vm197, %v213, %v83
    %v230 = vsel %vm198, %v214, %v90
    %v231 = vsel %vm199, %v215, %v97
    %v232 = vsel %vm200, %v216, %v104
    %v233 = vsel %vm201, %v217, %v111
    %v234 = vsel %vm202, %v218, %v118
    %v235 = vsel %vm203, %v219, %v125
    %v236 = vsel %vm204, %v220, %v132
    %v237 = vsel %vm205, %v221, %v139
    %v238 = vsel %vm206, %v222, %v146
    %v239 = vsel %vm207, %v223, %v153
    %v240 = vsel %vm208, %v224, %v160
    %vm241 = vcmp.ge.s32.totalorder %v225, 1
    %vm242 = vcmp.ge.s32.totalorder %v226, 1
    %vm243 = vcmp.ge.s32.totalorder %v227, 1
    %vm244 = vcmp.ge.s32.totalorder %v228, 1
    %vm245 = vcmp.ge.s32.totalorder %v229, 1
    %vm246 = vcmp.ge.s32.totalorder %v230, 1
    %vm247 = vcmp.ge.s32.totalorder %v231, 1
    %vm248 = vcmp.ge.s32.totalorder %v232, 1
    %vm249 = vcmp.ge.s32.totalorder %v233, 1
    %vm250 = vcmp.ge.s32.totalorder %v234, 1
    %vm251 = vcmp.ge.s32.totalorder %v235, 1
    %vm252 = vcmp.ge.s32.totalorder %v236, 1
    %vm253 = vcmp.ge.s32.totalorder %v237, 1
    %vm254 = vcmp.ge.s32.totalorder %v238, 1
    %vm255 = vcmp.ge.s32.totalorder %v239, 1
    %vm256 = vcmp.ge.s32.totalorder %v240, 1
    %vm257 = vcmp.le.s32.totalorder %v225, 14
    %vm258 = vcmp.le.s32.totalorder %v226, 14
    %vm259 = vcmp.le.s32.totalorder %v227, 14
    %vm260 = vcmp.le.s32.totalorder %v228, 14
    %vm261 = vcmp.le.s32.totalorder %v229, 14
    %vm262 = vcmp.le.s32.totalorder %v230, 14
    %vm263 = vcmp.le.s32.totalorder %v231, 14
    %vm264 = vcmp.le.s32.totalorder %v232, 14
    %vm265 = vcmp.le.s32.totalorder %v233, 14
    %vm266 = vcmp.le.s32.totalorder %v234, 14
    %vm267 = vcmp.le.s32.totalorder %v235, 14
    %vm268 = vcmp.le.s32.totalorder %v236, 14
    %vm269 = vcmp.le.s32.totalorder %v237, 14
    %vm270 = vcmp.le.s32.totalorder %v238, 14
    %vm271 = vcmp.le.s32.totalorder %v239, 14
    %vm272 = vcmp.le.s32.totalorder %v240, 14
    %vm273 = vcmp.lt.s32.totalorder %v33, 0
    %v274 = vsub.s32 0, %v33
    %v275 = vsel %vm273, %v274, %v33
    %v276 = vshrl.u32 %v275, 3
    %v277 = vand.u32 %v275, 7
    %v278 = vsub.s32 0, %v277
    %v279 = vsel %vm273, %v278, %v277
    %vm280 = vcmp.lt.s32.totalorder %v34, 0
    %v281 = vsub.s32 0, %v34
    %v282 = vsel %vm280, %v281, %v34
    %v283 = vshrl.u32 %v282, 3
    %v284 = vand.u32 %v282, 7
    %v285 = vsub.s32 0, %v284
    %v286 = vsel %vm280, %v285, %v284
    %vm287 = vcmp.lt.s32.totalorder %v35, 0
    %v288 = vsub.s32 0, %v35
    %v289 = vsel %vm287, %v288, %v35
    %v290 = vshrl.u32 %v289, 3
    %v291 = vand.u32 %v289, 7
    %v292 = vsub.s32 0, %v291
    %v293 = vsel %vm287, %v292, %v291
    %vm294 = vcmp.lt.s32.totalorder %v36, 0
    %v295 = vsub.s32 0, %v36
    %v296 = vsel %vm294, %v295, %v36
    %v297 = vshrl.u32 %v296, 3
    %v298 = vand.u32 %v296, 7
    %v299 = vsub.s32 0, %v298
    %v300 = vsel %vm294, %v299, %v298
    %vm301 = vcmp.lt.s32.totalorder %v37, 0
    %v302 = vsub.s32 0, %v37
    %v303 = vsel %vm301, %v302, %v37
    %v304 = vshrl.u32 %v303, 3
    %v305 = vand.u32 %v303, 7
    %v306 = vsub.s32 0, %v305
    %v307 = vsel %vm301, %v306, %v305
    %vm308 = vcmp.lt.s32.totalorder %v38, 0
    %v309 = vsub.s32 0, %v38
    %v310 = vsel %vm308, %v309, %v38
    %v311 = vshrl.u32 %v310, 3
    %v312 = vand.u32 %v310, 7
    %v313 = vsub.s32 0, %v312
    %v314 = vsel %vm308, %v313, %v312
    %vm315 = vcmp.lt.s32.totalorder %v39, 0
    %v316 = vsub.s32 0, %v39
    %v317 = vsel %vm315, %v316, %v39
    %v318 = vshrl.u32 %v317, 3
    %v319 = vand.u32 %v317, 7
    %v320 = vsub.s32 0, %v319
    %v321 = vsel %vm315, %v320, %v319
    %vm322 = vcmp.lt.s32.totalorder %v40, 0
    %v323 = vsub.s32 0, %v40
    %v324 = vsel %vm322, %v323, %v40
    %v325 = vshrl.u32 %v324, 3
    %v326 = vand.u32 %v324, 7
    %v327 = vsub.s32 0, %v326
    %v328 = vsel %vm322, %v327, %v326
    %vm329 = vcmp.ne.s32.totalorder %v279, 0
    %vm330 = vcmp.ne.s32.totalorder %v286, 0
    %vm331 = vcmp.ne.s32.totalorder %v293, 0
    %vm332 = vcmp.ne.s32.totalorder %v300, 0
    %vm333 = vcmp.ne.s32.totalorder %v307, 0
    %vm334 = vcmp.ne.s32.totalorder %v314, 0
    %vm335 = vcmp.ne.s32.totalorder %v321, 0
    %vm336 = vcmp.ne.s32.totalorder %v328, 0
    %vm337 = vcmp.lt.s32.totalorder %v279, 0
    %vm338 = vcmp.lt.s32.totalorder %v286, 0
    %vm339 = vcmp.lt.s32.totalorder %v293, 0
    %vm340 = vcmp.lt.s32.totalorder %v300, 0
    %vm341 = vcmp.lt.s32.totalorder %v307, 0
    %vm342 = vcmp.lt.s32.totalorder %v314, 0
    %vm343 = vcmp.lt.s32.totalorder %v321, 0
    %vm344 = vcmp.lt.s32.totalorder %v328, 0
    %vm345 = vmand %vm337, %vm329
    %vm346 = vmand %vm338, %vm330
    %vm347 = vmand %vm339, %vm331
    %vm348 = vmand %vm340, %vm332
    %vm349 = vmand %vm341, %vm333
    %vm350 = vmand %vm342, %vm334
    %vm351 = vmand %vm343, %vm335
    %vm352 = vmand %vm344, %vm336
    %v353 = vadd.s32 %v279, 8
    %v354 = vadd.s32 %v286, 8
    %v355 = vadd.s32 %v293, 8
    %v356 = vadd.s32 %v300, 8
    %v357 = vadd.s32 %v307, 8
    %v358 = vadd.s32 %v314, 8
    %v359 = vadd.s32 %v321, 8
    %v360 = vadd.s32 %v328, 8
    %v361 = vsel %vm345, %v353, %v279
    %v362 = vsel %vm346, %v354, %v286
    %v363 = vsel %vm347, %v355, %v293
    %v364 = vsel %vm348, %v356, %v300
    %v365 = vsel %vm349, %v357, %v307
    %v366 = vsel %vm350, %v358, %v314
    %v367 = vsel %vm351, %v359, %v321
    %v368 = vsel %vm352, %v360, %v328
    %vm369 = vcmp.ge.s32.totalorder %v361, 1
    %vm370 = vcmp.ge.s32.totalorder %v362, 1
    %vm371 = vcmp.ge.s32.totalorder %v363, 1
    %vm372 = vcmp.ge.s32.totalorder %v364, 1
    %vm373 = vcmp.ge.s32.totalorder %v365, 1
    %vm374 = vcmp.ge.s32.totalorder %v366, 1
    %vm375 = vcmp.ge.s32.totalorder %v367, 1
    %vm376 = vcmp.ge.s32.totalorder %v368, 1
    %vm377 = vcmp.le.s32.totalorder %v361, 6
    %vm378 = vcmp.le.s32.totalorder %v362, 6
    %vm379 = vcmp.le.s32.totalorder %v363, 6
    %vm380 = vcmp.le.s32.totalorder %v364, 6
    %vm381 = vcmp.le.s32.totalorder %v365, 6
    %vm382 = vcmp.le.s32.totalorder %v366, 6
    %vm383 = vcmp.le.s32.totalorder %v367, 6
    %vm384 = vcmp.le.s32.totalorder %v368, 6
    %v385 = vld [vmem:[%s0] sm:$0xf]
    %v386 = vld [vmem:[%s0 + $0x4] sm:$0xf]
    %v387 = vld [vmem:[%s0 + $0x8] sm:$0xf]
    %v388 = vld [vmem:[%s0 + $0xc] sm:$0xf]
    %v389 = vld [vmem:[%s0 + $0x10] sm:$0xf]
    %v390 = vld [vmem:[%s0 + $0x14] sm:$0xf]
    %v391 = vld [vmem:[%s0 + $0x18] sm:$0xf]
    %v392 = vld [vmem:[%s0 + $0x1c] sm:$0xf]
    %v393 = vld [vmem:[%s0 + $0x20] sm:$0xf]
    %v394 = vld [vmem:[%s0 + $0x24] sm:$0xf]
    %v395 = vld [vmem:[%s0 + $0x28] sm:$0xf]
    %v396 = vld [vmem:[%s0 + $0x2c] sm:$0xf]
    %v397 = vld [vmem:[%s0 + $0x30] sm:$0xf]
    %v398 = vld [vmem:[%s0 + $0x34] sm:$0xf]
    %v399 = vld [vmem:[%s0 + $0x38] sm:$0xf]
    %v400 = vld [vmem:[%s0 + $0x3c] sm:$0xf]
    %v401 = vld [vmem:[#allocation4] sm:$0xf]
    %v402 = vld [vmem:[#allocation4 + $0x4] sm:$0xf]
    %v403 = vperm.slane %v31, 0
    %v420 = vunpack.c.l.b16 %v385
    %v421 = vunpack.c.l.b16 %v386
    %v422 = vunpack.c.l.b16 %v387
    %v423 = vunpack.c.l.b16 %v388
    %v424 = vunpack.c.l.b16 %v389
    %v425 = vunpack.c.l.b16 %v390
    %v426 = vunpack.c.l.b16 %v391
    %v427 = vunpack.c.l.b16 %v392
    %v428 = vunpack.c.l.b16 %v393
    %v429 = vunpack.c.l.b16 %v394
    %v430 = vunpack.c.l.b16 %v395
    %v431 = vunpack.c.l.b16 %v396
    %v432 = vunpack.c.l.b16 %v397
    %v433 = vunpack.c.l.b16 %v398
    %v434 = vunpack.c.l.b16 %v399
    %v435 = vunpack.c.l.b16 %v400
    %v436 = vpack.c.b16 %v421, %v420
    %v437 = vpack.c.b16 %v423, %v422
    %v438 = vpack.c.b16 %v425, %v424
    %v439 = vpack.c.b16 %v427, %v426
    %v440 = vpack.c.b16 %v429, %v428
    %v441 = vpack.c.b16 %v431, %v430
    %v442 = vpack.c.b16 %v433, %v432
    %v443 = vpack.c.b16 %v435, %v434
    %v446 = vunpack.c.l.b16 %v401
    %v447 = vunpack.c.l.b16 %v402
    %v448 = vpack.c.b16 %v447, %v446
    %vm450 = vcmask 130048
    %v452 = vsel %vm450, %v436, 0
    %v455 = vsel %vm450, %v437, 0
    %v458 = vsel %vm450, %v438, 0
    %v461 = vsel %vm450, %v439, 0
    %v464 = vsel %vm450, %v440, 0
    %v467 = vsel %vm450, %v441, 0
    %v470 = vsel %vm450, %v442, 0
    %v473 = vsel %vm450, %v443, 0
    %475 = vmatpush.bf16.msra.mxu0 0
    %476 = vmatpush.bf16.msra.mxu0 0
    %477 = vmatpush.bf16.msra.mxu0 0
    %478 = vmatpush.bf16.msra.mxu0 0
    %479 = vmatpush.bf16.msra.mxu0 0
    %480 = vmatpush.bf16.msra.mxu0 0
    %481 = vmatpush.bf16.msra.mxu0 0
    %482 = vmatpush.bf16.msra.mxu0 %v448
    %483 = vmatmul.bf16.gmra.mxu0 %v452
    %v484 = vpop.f32.mrf.mxu0
    %v485 = vadd.f32 %v403, %v484
    %v486 = vpop.f32.mrf.mxu0
    %v487 = vadd.f32 %v403, %v486
    %488 = vmatmul.bf16.gmra.mxu0 %v455
    %v489 = vpop.f32.mrf.mxu0
    %v490 = vadd.f32 %v403, %v489
    %v491 = vpop.f32.mrf.mxu0
    %v492 = vadd.f32 %v403, %v491
    %493 = vmatmul.bf16.gmra.mxu0 %v458
    %v494 = vpop.f32.mrf.mxu0
    %v495 = vadd.f32 %v403, %v494
    %v496 = vpop.f32.mrf.mxu0
    %v497 = vadd.f32 %v403, %v496
    %498 = vmatmul.bf16.gmra.mxu0 %v461
    %v499 = vpop.f32.mrf.mxu0
    %v500 = vadd.f32 %v403, %v499
    %v501 = vpop.f32.mrf.mxu0
    %v502 = vadd.f32 %v403, %v501
    %503 = vmatmul.bf16.gmra.mxu0 %v464
    %v504 = vpop.f32.mrf.mxu0
    %v505 = vadd.f32 %v403, %v504
    %v506 = vpop.f32.mrf.mxu0
    %v507 = vadd.f32 %v403, %v506
    %508 = vmatmul.bf16.gmra.mxu0 %v467
    %v509 = vpop.f32.mrf.mxu0
    %v510 = vadd.f32 %v403, %v509
    %v511 = vpop.f32.mrf.mxu0
    %v512 = vadd.f32 %v403, %v511
    %513 = vmatmul.bf16.gmra.mxu0 %v470
    %v514 = vpop.f32.mrf.mxu0
    %v515 = vadd.f32 %v403, %v514
    %v516 = vpop.f32.mrf.mxu0
    %v517 = vadd.f32 %v403, %v516
    %518 = vmatmul.bf16.gmra.mxu0 %v473
    %v519 = vpop.f32.mrf.mxu0
    %v520 = vadd.f32 %v403, %v519
    %v521 = vpop.f32.mrf.mxu0
    %v522 = vadd.f32 %v403, %v521
    %523 = vdwg.mxu0
    %v524 = vmax.f32 %v485, 0.0
    %v525 = vmax.f32 %v487, 0.0
    %v526 = vmax.f32 %v490, 0.0
    %v527 = vmax.f32 %v492, 0.0
    %v528 = vmax.f32 %v495, 0.0
    %v529 = vmax.f32 %v497, 0.0
    %v530 = vmax.f32 %v500, 0.0
    %v531 = vmax.f32 %v502, 0.0
    %v532 = vmax.f32 %v505, 0.0
    %v533 = vmax.f32 %v507, 0.0
    %v534 = vmax.f32 %v510, 0.0
    %v535 = vmax.f32 %v512, 0.0
    %v536 = vmax.f32 %v515, 0.0
    %v537 = vmax.f32 %v517, 0.0
    %v538 = vmax.f32 %v520, 0.0
    %v539 = vmax.f32 %v522, 0.0
    %v540 = vld [vmem:[#allocation4 + $0x8] sm:$0xf]
    %v541 = vld [vmem:[#allocation4 + $0xc] sm:$0xf]
    %v542 = vld [vmem:[#allocation4 + $0x10] sm:$0xf]
    %v543 = vld [vmem:[#allocation4 + $0x14] sm:$0xf]
    %v544 = vld [vmem:[#allocation4 + $0x18] sm:$0xf]
    %v545 = vld [vmem:[#allocation4 + $0x1c] sm:$0xf]
    %v546 = vrot.slane %v524, 7
    %v547 = vrot.slane %v525, 7
    %v548 = vrot.slane %v526, 7
    %v549 = vrot.slane %v527, 7
    %v550 = vrot.slane %v528, 7
    %v551 = vrot.slane %v529, 7
    %v552 = vrot.slane %v530, 7
    %v553 = vrot.slane %v531, 7
    %v554 = vrot.slane %v532, 7
    %v555 = vrot.slane %v533, 7
    %v556 = vrot.slane %v534, 7
    %v557 = vrot.slane %v535, 7
    %v558 = vrot.slane %v536, 7
    %v559 = vrot.slane %v537, 7
    %v560 = vrot.slane %v538, 7
    %v561 = vrot.slane %v539, 7
    %vm562 = vcmp.lt.s32.totalorder %v33, 1
    %v563 = vsel %vm562, %v560, %v561
    %v564 = vsel %vm562, %v559, %v560
    %v565 = vsel %vm562, %v558, %v559
    %v566 = vsel %vm562, %v557, %v558
    %v567 = vsel %vm562, %v556, %v557
    %v568 = vsel %vm562, %v555, %v556
    %v569 = vsel %vm562, %v554, %v555
    %v570 = vsel %vm562, %v553, %v554
    %v571 = vsel %vm562, %v552, %v553
    %v572 = vsel %vm562, %v551, %v552
    %v573 = vsel %vm562, %v550, %v551
    %v574 = vsel %vm562, %v549, %v550
    %v575 = vsel %vm562, %v548, %v549
    %v576 = vsel %vm562, %v547, %v548
    %v577 = vsel %vm562, %v546, %v547
    %v578 = vsel %vm562, %v561, %v546
    %v579 = vsel %vm241, 1, 0
    %v580 = vsel %vm242, 1, 0
    %v581 = vsel %vm243, 1, 0
    %v582 = vsel %vm244, 1, 0
    %v583 = vsel %vm245, 1, 0
    %v584 = vsel %vm246, 1, 0
    %v585 = vsel %vm247, 1, 0
    %v586 = vsel %vm248, 1, 0
    %v587 = vsel %vm249, 1, 0
    %v588 = vsel %vm250, 1, 0
    %v589 = vsel %vm251, 1, 0
    %v590 = vsel %vm252, 1, 0
    %v591 = vsel %vm253, 1, 0
    %v592 = vsel %vm254, 1, 0
    %v593 = vsel %vm255, 1, 0
    %v594 = vsel %vm256, 1, 0
    %vm595 = vcmp.eq.s32.totalorder %v579, 1
    %vm596 = vcmp.eq.s32.totalorder %v580, 1
    %vm597 = vcmp.eq.s32.totalorder %v581, 1
    %vm598 = vcmp.eq.s32.totalorder %v582, 1
    %vm599 = vcmp.eq.s32.totalorder %v583, 1
    %vm600 = vcmp.eq.s32.totalorder %v584, 1
    %vm601 = vcmp.eq.s32.totalorder %v585, 1
    %vm602 = vcmp.eq.s32.totalorder %v586, 1
    %vm603 = vcmp.eq.s32.totalorder %v587, 1
    %vm604 = vcmp.eq.s32.totalorder %v588, 1
    %vm605 = vcmp.eq.s32.totalorder %v589, 1
    %vm606 = vcmp.eq.s32.totalorder %v590, 1
    %vm607 = vcmp.eq.s32.totalorder %v591, 1
    %vm608 = vcmp.eq.s32.totalorder %v592, 1
    %vm609 = vcmp.eq.s32.totalorder %v593, 1
    %vm610 = vcmp.eq.s32.totalorder %v594, 1
    %v611 = vsel %vm595, %v578, 0.0
    %v612 = vsel %vm596, %v577, 0.0
    %v613 = vsel %vm597, %v576, 0.0
    %v614 = vsel %vm598, %v575, 0.0
    %v615 = vsel %vm599, %v574, 0.0
    %v616 = vsel %vm600, %v573, 0.0
    %v617 = vsel %vm601, %v572, 0.0
    %v618 = vsel %vm602, %v571, 0.0
    %v619 = vsel %vm603, %v570, 0.0
    %v620 = vsel %vm604, %v569, 0.0
    %v621 = vsel %vm605, %v568, 0.0
    %v622 = vsel %vm606, %v567, 0.0
    %v623 = vsel %vm607, %v566, 0.0
    %v624 = vsel %vm608, %v565, 0.0
    %v625 = vsel %vm609, %v564, 0.0
    %v626 = vsel %vm610, %v563, 0.0
    %v627 = vrot.slane %v524, 1
    %v628 = vrot.slane %v525, 1
    %v629 = vrot.slane %v526, 1
    %v630 = vrot.slane %v527, 1
    %v631 = vrot.slane %v528, 1
    %v632 = vrot.slane %v529, 1
    %v633 = vrot.slane %v530, 1
    %v634 = vrot.slane %v531, 1
    %v635 = vrot.slane %v532, 1
    %v636 = vrot.slane %v533, 1
    %v637 = vrot.slane %v534, 1
    %v638 = vrot.slane %v535, 1
    %v639 = vrot.slane %v536, 1
    %v640 = vrot.slane %v537, 1
    %v641 = vrot.slane %v538, 1
    %v642 = vrot.slane %v539, 1
    %vm643 = vcmp.lt.s32.totalorder %v33, 7
    %v644 = vsel %vm643, %v641, %v642
    %v645 = vsel %vm643, %v640, %v641
    %v646 = vsel %vm643, %v639, %v640
    %v647 = vsel %vm643, %v638, %v639
    %v648 = vsel %vm643, %v637, %v638
    %v649 = vsel %vm643, %v636, %v637
    %v650 = vsel %vm643, %v635, %v636
    %v651 = vsel %vm643, %v634, %v635
    %v652 = vsel %vm643, %v633, %v634
    %v653 = vsel %vm643, %v632, %v633
    %v654 = vsel %vm643, %v631, %v632
    %v655 = vsel %vm643, %v630, %v631
    %v656 = vsel %vm643, %v629, %v630
    %v657 = vsel %vm643, %v628, %v629
    %v658 = vsel %vm643, %v627, %v628
    %v659 = vsel %vm643, %v642, %v627
    %v660 = vsel %vm257, 1, 0
    %v661 = vsel %vm258, 1, 0
    %v662 = vsel %vm259, 1, 0
    %v663 = vsel %vm260, 1, 0
    %v664 = vsel %vm261, 1, 0
    %v665 = vsel %vm262, 1, 0
    %v666 = vsel %vm263, 1, 0
    %v667 = vsel %vm264, 1, 0
    %v668 = vsel %vm265, 1, 0
    %v669 = vsel %vm266, 1, 0
    %v670 = vsel %vm267, 1, 0
    %v671 = vsel %vm268, 1, 0
    %v672 = vsel %vm269, 1, 0
    %v673 = vsel %vm270, 1, 0
    %v674 = vsel %vm271, 1, 0
    %v675 = vsel %vm272, 1, 0
    %vm676 = vcmp.eq.s32.totalorder %v660, 1
    %vm677 = vcmp.eq.s32.totalorder %v661, 1
    %vm678 = vcmp.eq.s32.totalorder %v662, 1
    %vm679 = vcmp.eq.s32.totalorder %v663, 1
    %vm680 = vcmp.eq.s32.totalorder %v664, 1
    %vm681 = vcmp.eq.s32.totalorder %v665, 1
    %vm682 = vcmp.eq.s32.totalorder %v666, 1
    %vm683 = vcmp.eq.s32.totalorder %v667, 1
    %vm684 = vcmp.eq.s32.totalorder %v668, 1
    %vm685 = vcmp.eq.s32.totalorder %v669, 1
    %vm686 = vcmp.eq.s32.totalorder %v670, 1
    %vm687 = vcmp.eq.s32.totalorder %v671, 1
    %vm688 = vcmp.eq.s32.totalorder %v672, 1
    %vm689 = vcmp.eq.s32.totalorder %v673, 1
    %vm690 = vcmp.eq.s32.totalorder %v674, 1
    %vm691 = vcmp.eq.s32.totalorder %v675, 1
    %v692 = vsel %vm676, %v658, 0.0
    %v693 = vsel %vm677, %v657, 0.0
    %v694 = vsel %vm678, %v656, 0.0
    %v695 = vsel %vm679, %v655, 0.0
    %v696 = vsel %vm680, %v654, 0.0
    %v697 = vsel %vm681, %v653, 0.0
    %v698 = vsel %vm682, %v652, 0.0
    %v699 = vsel %vm683, %v651, 0.0
    %v700 = vsel %vm684, %v650, 0.0
    %v701 = vsel %vm685, %v649, 0.0
    %v702 = vsel %vm686, %v648, 0.0
    %v703 = vsel %vm687, %v647, 0.0
    %v704 = vsel %vm688, %v646, 0.0
    %v705 = vsel %vm689, %v645, 0.0
    %v706 = vsel %vm690, %v644, 0.0
    %v707 = vsel %vm691, %v659, 0.0
    %724 = vrot.lane.b32.xlu0 %v524, 16
    %v725 = vpop.permute.xlu0 %724
    %726 = vrot.lane.b32.xlu0 %v525, 16
    %v727 = vpop.permute.xlu0 %726
    %728 = vrot.lane.b32.xlu0 %v526, 16
    %v729 = vpop.permute.xlu0 %728
    %730 = vrot.lane.b32.xlu0 %v527, 16
    %v731 = vpop.permute.xlu0 %730
    %732 = vrot.lane.b32.xlu0 %v528, 16
    %v733 = vpop.permute.xlu0 %732
    %734 = vrot.lane.b32.xlu0 %v529, 16
    %v735 = vpop.permute.xlu0 %734
    %736 = vrot.lane.b32.xlu0 %v530, 16
    %v737 = vpop.permute.xlu0 %736
    %738 = vrot.lane.b32.xlu0 %v531, 16
    %v739 = vpop.permute.xlu0 %738
    %740 = vrot.lane.b32.xlu0 %v532, 16
    %v741 = vpop.permute.xlu0 %740
    %742 = vrot.lane.b32.xlu0 %v533, 16
    %v743 = vpop.permute.xlu0 %742
    %744 = vrot.lane.b32.xlu0 %v534, 16
    %v745 = vpop.permute.xlu0 %744
    %746 = vrot.lane.b32.xlu0 %v535, 16
    %v747 = vpop.permute.xlu0 %746
    %748 = vrot.lane.b32.xlu0 %v536, 16
    %v749 = vpop.permute.xlu0 %748
    %750 = vrot.lane.b32.xlu0 %v537, 16
    %v751 = vpop.permute.xlu0 %750
    %752 = vrot.lane.b32.xlu0 %v538, 16
    %v753 = vpop.permute.xlu0 %752
    %754 = vrot.lane.b32.xlu0 %v539, 16
    %v755 = vpop.permute.xlu0 %754
    %788 = vrot.lane.b32.xlu0 %v692, 32
    %v789 = vpop.permute.xlu0 %788
    %790 = vrot.lane.b32.xlu0 %v693, 32
    %v791 = vpop.permute.xlu0 %790
    %792 = vrot.lane.b32.xlu0 %v694, 32
    %v793 = vpop.permute.xlu0 %792
    %794 = vrot.lane.b32.xlu0 %v695, 32
    %v795 = vpop.permute.xlu0 %794
    %796 = vrot.lane.b32.xlu0 %v696, 32
    %v797 = vpop.permute.xlu0 %796
    %798 = vrot.lane.b32.xlu0 %v697, 32
    %v799 = vpop.permute.xlu0 %798
    %800 = vrot.lane.b32.xlu0 %v698, 32
    %v801 = vpop.permute.xlu0 %800
    %802 = vrot.lane.b32.xlu0 %v699, 32
    %v803 = vpop.permute.xlu0 %802
    %804 = vrot.lane.b32.xlu0 %v700, 32
    %v805 = vpop.permute.xlu0 %804
    %806 = vrot.lane.b32.xlu0 %v701, 32
    %v807 = vpop.permute.xlu0 %806
    %808 = vrot.lane.b32.xlu0 %v702, 32
    %v809 = vpop.permute.xlu0 %808
    %810 = vrot.lane.b32.xlu0 %v703, 32
    %v811 = vpop.permute.xlu0 %810
    %812 = vrot.lane.b32.xlu0 %v704, 32
    %v813 = vpop.permute.xlu0 %812
    %814 = vrot.lane.b32.xlu0 %v705, 32
    %v815 = vpop.permute.xlu0 %814
    %816 = vrot.lane.b32.xlu0 %v706, 32
    %v817 = vpop.permute.xlu0 %816
    %818 = vrot.lane.b32.xlu0 %v707, 32
    %v819 = vpop.permute.xlu0 %818
    %v836 = vsel %vm450, %v611, %v725
    %v837 = vsel %vm450, %v612, %v727
    %v838 = vsel %vm450, %v613, %v729
    %v839 = vsel %vm450, %v614, %v731
    %v840 = vsel %vm450, %v615, %v733
    %v841 = vsel %vm450, %v616, %v735
    %v842 = vsel %vm450, %v617, %v737
    %v843 = vsel %vm450, %v618, %v739
    %v844 = vsel %vm450, %v619, %v741
    %v845 = vsel %vm450, %v620, %v743
    %v846 = vsel %vm450, %v621, %v745
    %v847 = vsel %vm450, %v622, %v747
    %v848 = vsel %vm450, %v623, %v749
    %v849 = vsel %vm450, %v624, %v751
    %v850 = vsel %vm450, %v625, %v753
    %v851 = vsel %vm450, %v626, %v755
    %vm852 = vcmask 261120
    %v853 = vsel %vm852, %v836, %v789
    %v854 = vsel %vm852, %v837, %v791
    %v855 = vsel %vm852, %v838, %v793
    %v856 = vsel %vm852, %v839, %v795
    %v857 = vsel %vm852, %v840, %v797
    %v858 = vsel %vm852, %v841, %v799
    %v859 = vsel %vm852, %v842, %v801
    %v860 = vsel %vm852, %v843, %v803
    %v861 = vsel %vm852, %v844, %v805
    %v862 = vsel %vm852, %v845, %v807
    %v863 = vsel %vm852, %v846, %v809
    %v864 = vsel %vm852, %v847, %v811
    %v865 = vsel %vm852, %v848, %v813
    %v866 = vsel %vm852, %v849, %v815
    %v867 = vsel %vm852, %v850, %v817
    %v868 = vsel %vm852, %v851, %v819
    %v869 = vpack.c.bf16 %v854, %v853
    %v870 = vpack.c.bf16 %v856, %v855
    %v871 = vpack.c.bf16 %v858, %v857
    %v872 = vpack.c.bf16 %v860, %v859
    %v873 = vpack.c.bf16 %v862, %v861
    %v874 = vpack.c.bf16 %v864, %v863
    %v875 = vpack.c.bf16 %v866, %v865
    %v876 = vpack.c.bf16 %v868, %v867
    %v877 = vperm.slane %v31, 1
    %v884 = vunpack.c.l.b16 %v540
    %v885 = vunpack.c.l.b16 %v541
    %v886 = vunpack.c.l.b16 %v542
    %v887 = vunpack.c.l.b16 %v543
    %v888 = vunpack.c.l.b16 %v544
    %v889 = vunpack.c.l.b16 %v545
    %v890 = vpack.c.b16 %v885, %v884
    %v891 = vpack.c.b16 %v887, %v886
    %v892 = vpack.c.b16 %v889, %v888
    %vm896 = vcmask 392192
    %v898 = vsel %vm896, %v869, 0
    %v901 = vsel %vm896, %v870, 0
    %v904 = vsel %vm896, %v871, 0
    %v907 = vsel %vm896, %v872, 0
    %v910 = vsel %vm896, %v873, 0
    %v913 = vsel %vm896, %v874, 0
    %v916 = vsel %vm896, %v875, 0
    %v919 = vsel %vm896, %v876, 0
    %921 = vmatpush.bf16.msra.mxu0 0
    %922 = vmatpush.bf16.msra.mxu0 0
    %923 = vmatpush.bf16.msra.mxu0 0
    %924 = vmatpush.bf16.msra.mxu0 0
    %925 = vmatpush.bf16.msra.mxu0 0
    %926 = vmatpush.bf16.msra.mxu0 %v892
    %927 = vmatpush.bf16.msra.mxu0 %v891
    %928 = vmatpush.bf16.msra.mxu0 %v890
    %929 = vmatmul.bf16.gmra.mxu0 %v898
    %v930 = vpop.f32.mrf.mxu0
    %v931 = vadd.f32 %v877, %v930
    %v932 = vpop.f32.mrf.mxu0
    %v933 = vadd.f32 %v877, %v932
    %934 = vmatmul.bf16.gmra.mxu0 %v901
    %v935 = vpop.f32.mrf.mxu0
    %v936 = vadd.f32 %v877, %v935
    %v937 = vpop.f32.mrf.mxu0
    %v938 = vadd.f32 %v877, %v937
    %939 = vmatmul.bf16.gmra.mxu0 %v904
    %v940 = vpop.f32.mrf.mxu0
    %v941 = vadd.f32 %v877, %v940
    %v942 = vpop.f32.mrf.mxu0
    %v943 = vadd.f32 %v877, %v942
    %944 = vmatmul.bf16.gmra.mxu0 %v907
    %v945 = vpop.f32.mrf.mxu0
    %v946 = vadd.f32 %v877, %v945
    %v947 = vpop.f32.mrf.mxu0
    %v948 = vadd.f32 %v877, %v947
    %949 = vmatmul.bf16.gmra.mxu0 %v910
    %v950 = vpop.f32.mrf.mxu0
    %v951 = vadd.f32 %v877, %v950
    %v952 = vpop.f32.mrf.mxu0
    %v953 = vadd.f32 %v877, %v952
    %954 = vmatmul.bf16.gmra.mxu0 %v913
    %v955 = vpop.f32.mrf.mxu0
    %v956 = vadd.f32 %v877, %v955
    %v957 = vpop.f32.mrf.mxu0
    %v958 = vadd.f32 %v877, %v957
    %959 = vmatmul.bf16.gmra.mxu0 %v916
    %v960 = vpop.f32.mrf.mxu0
    %v961 = vadd.f32 %v877, %v960
    %v962 = vpop.f32.mrf.mxu0
    %v963 = vadd.f32 %v877, %v962
    %964 = vmatmul.bf16.gmra.mxu0 %v919
    %v965 = vpop.f32.mrf.mxu0
    %v966 = vadd.f32 %v877, %v965
    %v967 = vpop.f32.mrf.mxu0
    %v968 = vadd.f32 %v877, %v967
    %969 = vdwg.mxu0
    %v970 = vmax.f32 %v931, 0.0
    %v971 = vmax.f32 %v933, 0.0
    %v972 = vmax.f32 %v936, 0.0
    %v973 = vmax.f32 %v938, 0.0
    %v974 = vmax.f32 %v941, 0.0
    %v975 = vmax.f32 %v943, 0.0
    %v976 = vmax.f32 %v946, 0.0
    %v977 = vmax.f32 %v948, 0.0
    %v978 = vmax.f32 %v951, 0.0
    %v979 = vmax.f32 %v953, 0.0
    %v980 = vmax.f32 %v956, 0.0
    %v981 = vmax.f32 %v958, 0.0
    %v982 = vmax.f32 %v961, 0.0
    %v983 = vmax.f32 %v963, 0.0
    %v984 = vmax.f32 %v966, 0.0
    %v985 = vmax.f32 %v968, 0.0
    %v986 = vrot.slane %v970, 1
    %v987 = vrot.slane %v971, 1
    %v988 = vrot.slane %v972, 1
    %v989 = vrot.slane %v973, 1
    %v990 = vrot.slane %v974, 1
    %v991 = vrot.slane %v975, 1
    %v992 = vrot.slane %v976, 1
    %v993 = vrot.slane %v977, 1
    %v994 = vrot.slane %v978, 1
    %v995 = vrot.slane %v979, 1
    %v996 = vrot.slane %v980, 1
    %v997 = vrot.slane %v981, 1
    %v998 = vrot.slane %v982, 1
    %v999 = vrot.slane %v983, 1
    %v1000 = vrot.slane %v984, 1
    %v1001 = vrot.slane %v985, 1
    %v1002 = vsel %vm643, %v1000, %v1001
    %v1003 = vsel %vm643, %v999, %v1000
    %v1004 = vsel %vm643, %v998, %v999
    %v1005 = vsel %vm643, %v997, %v998
    %v1006 = vsel %vm643, %v996, %v997
    %v1007 = vsel %vm643, %v995, %v996
    %v1008 = vsel %vm643, %v994, %v995
    %v1009 = vsel %vm643, %v993, %v994
    %v1010 = vsel %vm643, %v992, %v993
    %v1011 = vsel %vm643, %v991, %v992
    %v1012 = vsel %vm643, %v990, %v991
    %v1013 = vsel %vm643, %v989, %v990
    %v1014 = vsel %vm643, %v988, %v989
    %v1015 = vsel %vm643, %v987, %v988
    %v1016 = vsel %vm643, %v986, %v987
    %v1017 = vsel %vm643, %v1001, %v986
    %v1018 = vsel %vm676, %v1016, 0.0
    %v1019 = vsel %vm677, %v1015, 0.0
    %v1020 = vsel %vm678, %v1014, 0.0
    %v1021 = vsel %vm679, %v1013, 0.0
    %v1022 = vsel %vm680, %v1012, 0.0
    %v1023 = vsel %vm681, %v1011, 0.0
    %v1024 = vsel %vm682, %v1010, 0.0
    %v1025 = vsel %vm683, %v1009, 0.0
    %v1026 = vsel %vm684, %v1008, 0.0
    %v1027 = vsel %vm685, %v1007, 0.0
    %v1028 = vsel %vm686, %v1006, 0.0
    %v1029 = vsel %vm687, %v1005, 0.0
    %v1030 = vsel %vm688, %v1004, 0.0
    %v1031 = vsel %vm689, %v1003, 0.0
    %v1032 = vsel %vm690, %v1002, 0.0
    %v1033 = vsel %vm691, %v1017, 0.0
    %v1034 = vmax.f32 %v970, %v1018
    %v1035 = vmax.f32 %v971, %v1019
    %v1036 = vmax.f32 %v972, %v1020
    %v1037 = vmax.f32 %v973, %v1021
    %v1038 = vmax.f32 %v974, %v1022
    %v1039 = vmax.f32 %v975, %v1023
    %v1040 = vmax.f32 %v976, %v1024
    %v1041 = vmax.f32 %v977, %v1025
    %v1042 = vmax.f32 %v978, %v1026
    %v1043 = vmax.f32 %v979, %v1027
    %v1044 = vmax.f32 %v980, %v1028
    %v1045 = vmax.f32 %v981, %v1029
    %v1046 = vmax.f32 %v982, %v1030
    %v1047 = vmax.f32 %v983, %v1031
    %v1048 = vmax.f32 %v984, %v1032
    %v1049 = vmax.f32 %v985, %v1033
    %1050 = vst.msk [vmem:[#allocation2] sm:$0xff] %vm852, %v1034
    %1051 = vst.msk [vmem:[#allocation2 + $0x8] sm:$0xff] %vm852, %v1035
    %1052 = vst.msk [vmem:[#allocation2 + $0x10] sm:$0xff] %vm852, %v1036
    %1053 = vst.msk [vmem:[#allocation2 + $0x18] sm:$0xff] %vm852, %v1037
    %1054 = vst.msk [vmem:[#allocation2 + $0x20] sm:$0xff] %vm852, %v1038
    %1055 = vst.msk [vmem:[#allocation2 + $0x28] sm:$0xff] %vm852, %v1039
    %1056 = vst.msk [vmem:[#allocation2 + $0x30] sm:$0xff] %vm852, %v1040
    %1057 = vst.msk [vmem:[#allocation2 + $0x38] sm:$0xff] %vm852, %v1041
    %1058 = vst.msk [vmem:[#allocation2 + $0x40] sm:$0xff] %vm852, %v1042
    %1059 = vst.msk [vmem:[#allocation2 + $0x48] sm:$0xff] %vm852, %v1043
    %1060 = vst.msk [vmem:[#allocation2 + $0x50] sm:$0xff] %vm852, %v1044
    %1061 = vst.msk [vmem:[#allocation2 + $0x58] sm:$0xff] %vm852, %v1045
    %1062 = vst.msk [vmem:[#allocation2 + $0x60] sm:$0xff] %vm852, %v1046
    %1063 = vst.msk [vmem:[#allocation2 + $0x68] sm:$0xff] %vm852, %v1047
    %1064 = vst.msk [vmem:[#allocation2 + $0x70] sm:$0xff] %vm852, %v1048
    %1065 = vst.msk [vmem:[#allocation2 + $0x78] sm:$0xff] %vm852, %v1049
    %v1066 = vld [vmem:[#allocation2] ss:$2 sm:$0xff]
    %s1067 = scalar_lea.vmem [#allocation2], 16
    %v1068 = vld [vmem:[%s1067] ss:$2 sm:$0xff]
    %s1069 = scalar_lea.vmem [#allocation2], 32
    %v1070 = vld [vmem:[%s1069] ss:$2 sm:$0xff]
    %s1071 = scalar_lea.vmem [#allocation2], 48
    %v1072 = vld [vmem:[%s1071] ss:$2 sm:$0xff]
    %s1073 = scalar_lea.vmem [#allocation2], 64
    %v1074 = vld [vmem:[%s1073] ss:$2 sm:$0xff]
    %s1075 = scalar_lea.vmem [#allocation2], 80
    %v1076 = vld [vmem:[%s1075] ss:$2 sm:$0xff]
    %s1077 = scalar_lea.vmem [#allocation2], 96
    %v1078 = vld [vmem:[%s1077] ss:$2 sm:$0xff]
    %s1079 = scalar_lea.vmem [#allocation2], 112
    %v1080 = vld [vmem:[%s1079] ss:$2 sm:$0xff]
    %v1081 = vld [vmem:[#allocation4 + $0x20] sm:$0xf]
    %v1082 = vld [vmem:[#allocation4 + $0x24] sm:$0xf]
    %v1083 = vld [vmem:[#allocation4 + $0x28] sm:$0xf]
    %v1084 = vld [vmem:[#allocation4 + $0x2c] sm:$0xf]
    %v1085 = vld [vmem:[#allocation4 + $0x30] sm:$0xf]
    %v1086 = vld [vmem:[#allocation4 + $0x34] sm:$0xf]
    %v1087 = vld [vmem:[#allocation4 + $0x38] sm:$0xf]
    %v1088 = vld [vmem:[#allocation4 + $0x3c] sm:$0xf]
    %v1089 = vld [vmem:[#allocation4 + $0x40] sm:$0xf]
    %v1090 = vld [vmem:[#allocation4 + $0x44] sm:$0xf]
    %v1091 = vld [vmem:[#allocation4 + $0x48] sm:$0xf]
    %v1092 = vld [vmem:[#allocation4 + $0x4c] sm:$0xf]
    %v1093 = vrot.slane %v1066, 7
    %v1094 = vrot.slane %v1068, 7
    %v1095 = vrot.slane %v1070, 7
    %v1096 = vrot.slane %v1072, 7
    %v1097 = vrot.slane %v1074, 7
    %v1098 = vrot.slane %v1076, 7
    %v1099 = vrot.slane %v1078, 7
    %v1100 = vrot.slane %v1080, 7
    %v1101 = vsel %vm562, %v1099, %v1100
    %v1102 = vsel %vm562, %v1098, %v1099
    %v1103 = vsel %vm562, %v1097, %v1098
    %v1104 = vsel %vm562, %v1096, %v1097
    %v1105 = vsel %vm562, %v1095, %v1096
    %v1106 = vsel %vm562, %v1094, %v1095
    %v1107 = vsel %vm562, %v1093, %v1094
    %v1108 = vsel %vm562, %v1100, %v1093
    %v1109 = vsel %vm369, 1, 0
    %v1110 = vsel %vm370, 1, 0
    %v1111 = vsel %vm371, 1, 0
    %v1112 = vsel %vm372, 1, 0
    %v1113 = vsel %vm373, 1, 0
    %v1114 = vsel %vm374, 1, 0
    %v1115 = vsel %vm375, 1, 0
    %v1116 = vsel %vm376, 1, 0
    %vm1117 = vcmp.eq.s32.totalorder %v1109, 1
    %vm1118 = vcmp.eq.s32.totalorder %v1110, 1
    %vm1119 = vcmp.eq.s32.totalorder %v1111, 1
    %vm1120 = vcmp.eq.s32.totalorder %v1112, 1
    %vm1121 = vcmp.eq.s32.totalorder %v1113, 1
    %vm1122 = vcmp.eq.s32.totalorder %v1114, 1
    %vm1123 = vcmp.eq.s32.totalorder %v1115, 1
    %vm1124 = vcmp.eq.s32.totalorder %v1116, 1
    %v1125 = vsel %vm1117, %v1108, 0.0
    %v1126 = vsel %vm1118, %v1107, 0.0
    %v1127 = vsel %vm1119, %v1106, 0.0
    %v1128 = vsel %vm1120, %v1105, 0.0
    %v1129 = vsel %vm1121, %v1104, 0.0
    %v1130 = vsel %vm1122, %v1103, 0.0
    %v1131 = vsel %vm1123, %v1102, 0.0
    %v1132 = vsel %vm1124, %v1101, 0.0
    %v1133 = vrot.slane %v1066, 1
    %v1134 = vrot.slane %v1068, 1
    %v1135 = vrot.slane %v1070, 1
    %v1136 = vrot.slane %v1072, 1
    %v1137 = vrot.slane %v1074, 1
    %v1138 = vrot.slane %v1076, 1
    %v1139 = vrot.slane %v1078, 1
    %v1140 = vrot.slane %v1080, 1
    %v1141 = vsel %vm643, %v1139, %v1140
    %v1142 = vsel %vm643, %v1138, %v1139
    %v1143 = vsel %vm643, %v1137, %v1138
    %v1144 = vsel %vm643, %v1136, %v1137
    %v1145 = vsel %vm643, %v1135, %v1136
    %v1146 = vsel %vm643, %v1134, %v1135
    %v1147 = vsel %vm643, %v1133, %v1134
    %v1148 = vsel %vm643, %v1140, %v1133
    %v1149 = vsel %vm377, 1, 0
    %v1150 = vsel %vm378, 1, 0
    %v1151 = vsel %vm379, 1, 0
    %v1152 = vsel %vm380, 1, 0
    %v1153 = vsel %vm381, 1, 0
    %v1154 = vsel %vm382, 1, 0
    %v1155 = vsel %vm383, 1, 0
    %v1156 = vsel %vm384, 1, 0
    %vm1157 = vcmp.eq.s32.totalorder %v1149, 1
    %vm1158 = vcmp.eq.s32.totalorder %v1150, 1
    %vm1159 = vcmp.eq.s32.totalorder %v1151, 1
    %vm1160 = vcmp.eq.s32.totalorder %v1152, 1
    %vm1161 = vcmp.eq.s32.totalorder %v1153, 1
    %vm1162 = vcmp.eq.s32.totalorder %v1154, 1
    %vm1163 = vcmp.eq.s32.totalorder %v1155, 1
    %vm1164 = vcmp.eq.s32.totalorder %v1156, 1
    %v1165 = vsel %vm1157, %v1147, 0.0
    %v1166 = vsel %vm1158, %v1146, 0.0
    %v1167 = vsel %vm1159, %v1145, 0.0
    %v1168 = vsel %vm1160, %v1144, 0.0
    %v1169 = vsel %vm1161, %v1143, 0.0
    %v1170 = vsel %vm1162, %v1142, 0.0
    %v1171 = vsel %vm1163, %v1141, 0.0
    %v1172 = vsel %vm1164, %v1148, 0.0
    %1181 = vrot.lane.b32.xlu0 %v1066, 32
    %v1182 = vpop.permute.xlu0 %1181
    %1183 = vrot.lane.b32.xlu0 %v1068, 32
    %v1184 = vpop.permute.xlu0 %1183
    %1185 = vrot.lane.b32.xlu0 %v1070, 32
    %v1186 = vpop.permute.xlu0 %1185
    %1187 = vrot.lane.b32.xlu0 %v1072, 32
    %v1188 = vpop.permute.xlu0 %1187
    %1189 = vrot.lane.b32.xlu0 %v1074, 32
    %v1190 = vpop.permute.xlu0 %1189
    %1191 = vrot.lane.b32.xlu0 %v1076, 32
    %v1192 = vpop.permute.xlu0 %1191
    %1193 = vrot.lane.b32.xlu0 %v1078, 32
    %v1194 = vpop.permute.xlu0 %1193
    %1195 = vrot.lane.b32.xlu0 %v1080, 32
    %v1196 = vpop.permute.xlu0 %1195
    %1213 = vrot.lane.b32.xlu0 %v1165, 64
    %v1214 = vpop.permute.xlu0 %1213
    %1215 = vrot.lane.b32.xlu0 %v1166, 64
    %v1216 = vpop.permute.xlu0 %1215
    %1217 = vrot.lane.b32.xlu0 %v1167, 64
    %v1218 = vpop.permute.xlu0 %1217
    %1219 = vrot.lane.b32.xlu0 %v1168, 64
    %v1220 = vpop.permute.xlu0 %1219
    %1221 = vrot.lane.b32.xlu0 %v1169, 64
    %v1222 = vpop.permute.xlu0 %1221
    %1223 = vrot.lane.b32.xlu0 %v1170, 64
    %v1224 = vpop.permute.xlu0 %1223
    %1225 = vrot.lane.b32.xlu0 %v1171, 64
    %v1226 = vpop.permute.xlu0 %1225
    %1227 = vrot.lane.b32.xlu0 %v1172, 64
    %v1228 = vpop.permute.xlu0 %1227
    %v1237 = vsel %vm852, %v1125, %v1182
    %v1238 = vsel %vm852, %v1126, %v1184
    %v1239 = vsel %vm852, %v1127, %v1186
    %v1240 = vsel %vm852, %v1128, %v1188
    %v1241 = vsel %vm852, %v1129, %v1190
    %v1242 = vsel %vm852, %v1130, %v1192
    %v1243 = vsel %vm852, %v1131, %v1194
    %v1244 = vsel %vm852, %v1132, %v1196
    %vm1245 = vcmask 523264
    %v1246 = vsel %vm1245, %v1237, %v1214
    %v1247 = vsel %vm1245, %v1238, %v1216
    %v1248 = vsel %vm1245, %v1239, %v1218
    %v1249 = vsel %vm1245, %v1240, %v1220
    %v1250 = vsel %vm1245, %v1241, %v1222
    %v1251 = vsel %vm1245, %v1242, %v1224
    %v1252 = vsel %vm1245, %v1243, %v1226
    %v1253 = vsel %vm1245, %v1244, %v1228
    %v1254 = vpack.c.bf16 %v1247, %v1246
    %v1255 = vpack.c.bf16 %v1249, %v1248
    %v1256 = vpack.c.bf16 %v1251, %v1250
    %v1257 = vpack.c.bf16 %v1253, %v1252
    %v1258 = vperm.slane %v31, 2
    %v1271 = vunpack.c.l.b16 %v1081
    %v1272 = vunpack.c.l.b16 %v1082
    %v1273 = vunpack.c.l.b16 %v1083
    %v1274 = vunpack.c.l.b16 %v1084
    %v1275 = vunpack.c.l.b16 %v1085
    %v1276 = vunpack.c.l.b16 %v1086
    %v1277 = vunpack.c.l.b16 %v1087
    %v1278 = vunpack.c.l.b16 %v1088
    %v1279 = vunpack.c.l.b16 %v1089
    %v1280 = vunpack.c.l.b16 %v1090
    %v1281 = vunpack.c.l.b16 %v1091
    %v1282 = vunpack.c.l.b16 %v1092
    %v1283 = vpack.c.b16 %v1272, %v1271
    %v1284 = vpack.c.b16 %v1274, %v1273
    %v1285 = vpack.c.b16 %v1276, %v1275
    %v1286 = vpack.c.b16 %v1278, %v1277
    %v1287 = vpack.c.b16 %v1280, %v1279
    %v1288 = vpack.c.b16 %v1282, %v1281
    %vm1295 = vcmask 785408
    %v1297 = vsel %vm1295, %v1254, 0
    %v1300 = vsel %vm1295, %v1255, 0
    %v1303 = vsel %vm1295, %v1256, 0
    %v1306 = vsel %vm1295, %v1257, 0
    %1308 = vmatpush.bf16.msra.mxu0 0
    %1309 = vmatpush.bf16.msra.mxu0 0
    %1310 = vmatpush.bf16.msra.mxu0 %v1288
    %1311 = vmatpush.bf16.msra.mxu0 %v1287
    %1312 = vmatpush.bf16.msra.mxu0 %v1286
    %1313 = vmatpush.bf16.msra.mxu0 %v1285
    %1314 = vmatpush.bf16.msra.mxu0 %v1284
    %1315 = vmatpush.bf16.msra.mxu0 %v1283
    %1316 = vmatmul.bf16.gmra.mxu0 %v1297
    %v1317 = vpop.f32.mrf.mxu0
    %v1318 = vadd.f32 %v1258, %v1317
    %v1319 = vpop.f32.mrf.mxu0
    %v1320 = vadd.f32 %v1258, %v1319
    %1321 = vmatmul.bf16.gmra.mxu0 %v1300
    %v1322 = vpop.f32.mrf.mxu0
    %v1323 = vadd.f32 %v1258, %v1322
    %v1324 = vpop.f32.mrf.mxu0
    %v1325 = vadd.f32 %v1258, %v1324
    %1326 = vmatmul.bf16.gmra.mxu0 %v1303
    %v1327 = vpop.f32.mrf.mxu0
    %v1328 = vadd.f32 %v1258, %v1327
    %v1329 = vpop.f32.mrf.mxu0
    %v1330 = vadd.f32 %v1258, %v1329
    %1331 = vmatmul.bf16.gmra.mxu0 %v1306
    %v1332 = vpop.f32.mrf.mxu0
    %v1333 = vadd.f32 %v1258, %v1332
    %v1334 = vpop.f32.mrf.mxu0
    %v1335 = vadd.f32 %v1258, %v1334
    %1336 = vdwg.mxu0
    %v1337 = vmax.f32 %v1318, 0.0
    %v1338 = vmax.f32 %v1320, 0.0
    %v1339 = vmax.f32 %v1323, 0.0
    %v1340 = vmax.f32 %v1325, 0.0
    %v1341 = vmax.f32 %v1328, 0.0
    %v1342 = vmax.f32 %v1330, 0.0
    %v1343 = vmax.f32 %v1333, 0.0
    %v1344 = vmax.f32 %v1335, 0.0
    %v1345 = vld [vmem:[#allocation4 + $0x50] sm:$0xf]
    %v1346 = vld [vmem:[#allocation4 + $0x54] sm:$0xf]
    %v1347 = vld [vmem:[#allocation4 + $0x58] sm:$0xf]
    %v1348 = vld [vmem:[#allocation4 + $0x5c] sm:$0xf]
    %v1349 = vld [vmem:[#allocation4 + $0x60] sm:$0xf]
    %v1350 = vld [vmem:[#allocation4 + $0x64] sm:$0xf]
    %v1351 = vld [vmem:[#allocation4 + $0x68] sm:$0xf]
    %v1352 = vld [vmem:[#allocation4 + $0x6c] sm:$0xf]
    %v1353 = vld [vmem:[#allocation4 + $0x70] sm:$0xf]
    %v1354 = vld [vmem:[#allocation4 + $0x74] sm:$0xf]
    %v1355 = vld [vmem:[#allocation4 + $0x78] sm:$0xf]
    %v1356 = vld [vmem:[#allocation4 + $0x7c] sm:$0xf]
    %v1357 = vld [vmem:[#allocation4 + $0x80] sm:$0xf]
    %v1358 = vld [vmem:[#allocation4 + $0x84] sm:$0xf]
    %v1359 = vld [vmem:[#allocation4 + $0x88] sm:$0xf]
    %v1360 = vld [vmem:[#allocation4 + $0x8c] sm:$0xf]
    %v1361 = vld [vmem:[#allocation4 + $0x90] sm:$0xf]
    %v1362 = vld [vmem:[#allocation4 + $0x94] sm:$0xf]
    %v1363 = vld [vmem:[#allocation4 + $0x98] sm:$0xf]
    %v1364 = vld [vmem:[#allocation4 + $0x9c] sm:$0xf]
    %v1365 = vld [vmem:[#allocation4 + $0xa0] sm:$0xf]
    %v1366 = vld [vmem:[#allocation4 + $0xa4] sm:$0xf]
    %v1367 = vld [vmem:[#allocation4 + $0xa8] sm:$0xf]
    %v1368 = vld [vmem:[#allocation4 + $0xac] sm:$0xf]
    %v1369 = vrot.slane %v1337, 7
    %v1370 = vrot.slane %v1338, 7
    %v1371 = vrot.slane %v1339, 7
    %v1372 = vrot.slane %v1340, 7
    %v1373 = vrot.slane %v1341, 7
    %v1374 = vrot.slane %v1342, 7
    %v1375 = vrot.slane %v1343, 7
    %v1376 = vrot.slane %v1344, 7
    %v1377 = vsel %vm562, %v1375, %v1376
    %v1378 = vsel %vm562, %v1374, %v1375
    %v1379 = vsel %vm562, %v1373, %v1374
    %v1380 = vsel %vm562, %v1372, %v1373
    %v1381 = vsel %vm562, %v1371, %v1372
    %v1382 = vsel %vm562, %v1370, %v1371
    %v1383 = vsel %vm562, %v1369, %v1370
    %v1384 = vsel %vm562, %v1376, %v1369
    %v1385 = vsel %vm1117, %v1384, 0.0
    %v1386 = vsel %vm1118, %v1383, 0.0
    %v1387 = vsel %vm1119, %v1382, 0.0
    %v1388 = vsel %vm1120, %v1381, 0.0
    %v1389 = vsel %vm1121, %v1380, 0.0
    %v1390 = vsel %vm1122, %v1379, 0.0
    %v1391 = vsel %vm1123, %v1378, 0.0
    %v1392 = vsel %vm1124, %v1377, 0.0
    %v1393 = vrot.slane %v1337, 1
    %v1394 = vrot.slane %v1338, 1
    %v1395 = vrot.slane %v1339, 1
    %v1396 = vrot.slane %v1340, 1
    %v1397 = vrot.slane %v1341, 1
    %v1398 = vrot.slane %v1342, 1
    %v1399 = vrot.slane %v1343, 1
    %v1400 = vrot.slane %v1344, 1
    %v1401 = vsel %vm643, %v1399, %v1400
    %v1402 = vsel %vm643, %v1398, %v1399
    %v1403 = vsel %vm643, %v1397, %v1398
    %v1404 = vsel %vm643, %v1396, %v1397
    %v1405 = vsel %vm643, %v1395, %v1396
    %v1406 = vsel %vm643, %v1394, %v1395
    %v1407 = vsel %vm643, %v1393, %v1394
    %v1408 = vsel %vm643, %v1400, %v1393
    %v1409 = vsel %vm1157, %v1407, 0.0
    %v1410 = vsel %vm1158, %v1406, 0.0
    %v1411 = vsel %vm1159, %v1405, 0.0
    %v1412 = vsel %vm1160, %v1404, 0.0
    %v1413 = vsel %vm1161, %v1403, 0.0
    %v1414 = vsel %vm1162, %v1402, 0.0
    %v1415 = vsel %vm1163, %v1401, 0.0
    %v1416 = vsel %vm1164, %v1408, 0.0
    %1425 = vrot.lane.b32.xlu0 %v1337, 64
    %v1426 = vpop.permute.xlu0 %1425
    %1427 = vrot.lane.b32.xlu0 %v1338, 64
    %v1428 = vpop.permute.xlu0 %1427
    %1429 = vrot.lane.b32.xlu0 %v1339, 64
    %v1430 = vpop.permute.xlu0 %1429
    %1431 = vrot.lane.b32.xlu0 %v1340, 64
    %v1432 = vpop.permute.xlu0 %1431
    %1433 = vrot.lane.b32.xlu0 %v1341, 64
    %v1434 = vpop.permute.xlu0 %1433
    %1435 = vrot.lane.b32.xlu0 %v1342, 64
    %v1436 = vpop.permute.xlu0 %1435
    %1437 = vrot.lane.b32.xlu0 %v1343, 64
    %v1438 = vpop.permute.xlu0 %1437
    %1439 = vrot.lane.b32.xlu0 %v1344, 64
    %v1440 = vpop.permute.xlu0 %1439
    %v1449 = vsel %vm1245, %v1385, %v1426
    %v1450 = vsel %vm1245, %v1386, %v1428
    %v1451 = vsel %vm1245, %v1387, %v1430
    %v1452 = vsel %vm1245, %v1388, %v1432
    %v1453 = vsel %vm1245, %v1389, %v1434
    %v1454 = vsel %vm1245, %v1390, %v1436
    %v1455 = vsel %vm1245, %v1391, %v1438
    %v1456 = vsel %vm1245, %v1392, %v1440
    %v1457 = vpack.c.bf16 %v1450, %v1449
    %v1458 = vpack.c.bf16 %v1410, %v1409
    %v1459 = vpack.c.bf16 %v1452, %v1451
    %v1460 = vpack.c.bf16 %v1412, %v1411
    %v1461 = vpack.c.bf16 %v1454, %v1453
    %v1462 = vpack.c.bf16 %v1414, %v1413
    %v1463 = vpack.c.bf16 %v1456, %v1455
    %v1464 = vpack.c.bf16 %v1416, %v1415
    %v1465 = vperm.slane %v31, 3
    %v1490 = vunpack.c.l.b16 %v1345
    %v1491 = vunpack.c.l.b16 %v1346
    %v1492 = vunpack.c.l.b16 %v1347
    %v1493 = vunpack.c.l.b16 %v1348
    %v1494 = vunpack.c.l.b16 %v1349
    %v1495 = vunpack.c.l.b16 %v1350
    %v1496 = vunpack.c.l.b16 %v1351
    %v1497 = vunpack.c.l.b16 %v1352
    %v1498 = vunpack.c.l.b16 %v1353
    %v1499 = vunpack.c.l.b16 %v1354
    %v1500 = vunpack.c.l.b16 %v1355
    %v1501 = vunpack.c.l.b16 %v1356
    %v1502 = vunpack.c.l.b16 %v1357
    %v1503 = vunpack.c.l.b16 %v1358
    %v1504 = vunpack.c.l.b16 %v1359
    %v1505 = vunpack.c.l.b16 %v1360
    %v1506 = vunpack.c.l.b16 %v1361
    %v1507 = vunpack.c.l.b16 %v1362
    %v1508 = vunpack.c.l.b16 %v1363
    %v1509 = vunpack.c.l.b16 %v1364
    %v1510 = vunpack.c.l.b16 %v1365
    %v1511 = vunpack.c.l.b16 %v1366
    %v1512 = vunpack.c.l.b16 %v1367
    %v1513 = vunpack.c.l.b16 %v1368
    %v1514 = vpack.c.b16 %v1491, %v1490
    %v1515 = vpack.c.b16 %v1493, %v1492
    %v1516 = vpack.c.b16 %v1495, %v1494
    %v1517 = vpack.c.b16 %v1497, %v1496
    %v1518 = vpack.c.b16 %v1499, %v1498
    %v1519 = vpack.c.b16 %v1501, %v1500
    %v1520 = vpack.c.b16 %v1503, %v1502
    %v1521 = vpack.c.b16 %v1505, %v1504
    %v1522 = vpack.c.b16 %v1507, %v1506
    %v1523 = vpack.c.b16 %v1509, %v1508
    %v1524 = vpack.c.b16 %v1511, %v1510
    %v1525 = vpack.c.b16 %v1513, %v1512
    %v1539 = vsel %vm1245, %v1458, 0
    %v1542 = vsel %vm1245, %v1460, 0
    %v1545 = vsel %vm1245, %v1462, 0
    %v1548 = vsel %vm1245, %v1464, 0
    %1550 = vmatpush.bf16.msra.mxu0 %v1521
    %1551 = vmatpush.bf16.msra.mxu0 %v1520
    %1552 = vmatpush.bf16.msra.mxu0 %v1519
    %1553 = vmatpush.bf16.msra.mxu0 %v1518
    %1554 = vmatpush.bf16.msra.mxu0 %v1517
    %1555 = vmatpush.bf16.msra.mxu0 %v1516
    %1556 = vmatpush.bf16.msra.mxu0 %v1515
    %1557 = vmatpush.bf16.msra.mxu0 %v1514
    %1558 = vmatmul.bf16.gmra.mxu0 %v1457
    %v1559 = vpop.f32.mrf.mxu0
    %v1560 = vadd.f32 %v1465, %v1559
    %v1561 = vpop.f32.mrf.mxu0
    %v1562 = vadd.f32 %v1465, %v1561
    %1563 = vmatmul.bf16.gmra.mxu0 %v1459
    %v1564 = vpop.f32.mrf.mxu0
    %v1565 = vadd.f32 %v1465, %v1564
    %v1566 = vpop.f32.mrf.mxu0
    %v1567 = vadd.f32 %v1465, %v1566
    %1568 = vmatmul.bf16.gmra.mxu0 %v1461
    %v1569 = vpop.f32.mrf.mxu0
    %v1570 = vadd.f32 %v1465, %v1569
    %v1571 = vpop.f32.mrf.mxu0
    %v1572 = vadd.f32 %v1465, %v1571
    %1573 = vmatmul.bf16.gmra.mxu0 %v1463
    %v1574 = vpop.f32.mrf.mxu0
    %v1575 = vadd.f32 %v1465, %v1574
    %v1576 = vpop.f32.mrf.mxu0
    %v1577 = vadd.f32 %v1465, %v1576
    %1578 = vdwg.mxu0
    %1579 = vmatpush.bf16.msra.mxu0 0
    %1580 = vmatpush.bf16.msra.mxu0 0
    %1581 = vmatpush.bf16.msra.mxu0 0
    %1582 = vmatpush.bf16.msra.mxu0 0
    %1583 = vmatpush.bf16.msra.mxu0 %v1525
    %1584 = vmatpush.bf16.msra.mxu0 %v1524
    %1585 = vmatpush.bf16.msra.mxu0 %v1523
    %1586 = vmatpush.bf16.msra.mxu0 %v1522
    %1587 = vmatmul.bf16.gmra.mxu0 %v1539
    %v1588 = vpop.f32.mrf.mxu0
    %v1589 = vadd.f32 %v1560, %v1588
    %v1590 = vpop.f32.mrf.mxu0
    %v1591 = vadd.f32 %v1562, %v1590
    %1592 = vmatmul.bf16.gmra.mxu0 %v1542
    %v1593 = vpop.f32.mrf.mxu0
    %v1594 = vadd.f32 %v1565, %v1593
    %v1595 = vpop.f32.mrf.mxu0
    %v1596 = vadd.f32 %v1567, %v1595
    %1597 = vmatmul.bf16.gmra.mxu0 %v1545
    %v1598 = vpop.f32.mrf.mxu0
    %v1599 = vadd.f32 %v1570, %v1598
    %v1600 = vpop.f32.mrf.mxu0
    %v1601 = vadd.f32 %v1572, %v1600
    %1602 = vmatmul.bf16.gmra.mxu0 %v1548
    %v1603 = vpop.f32.mrf.mxu0
    %v1604 = vadd.f32 %v1575, %v1603
    %v1605 = vpop.f32.mrf.mxu0
    %v1606 = vadd.f32 %v1577, %v1605
    %1607 = vdwg.mxu0
    %v1608 = vmax.f32 %v1589, 0.0
    %v1609 = vmax.f32 %v1591, 0.0
    %v1610 = vmax.f32 %v1594, 0.0
    %v1611 = vmax.f32 %v1596, 0.0
    %v1612 = vmax.f32 %v1599, 0.0
    %v1613 = vmax.f32 %v1601, 0.0
    %v1614 = vmax.f32 %v1604, 0.0
    %v1615 = vmax.f32 %v1606, 0.0
    %v1616 = vrot.slane %v1608, 1
    %v1617 = vrot.slane %v1609, 1
    %v1618 = vrot.slane %v1610, 1
    %v1619 = vrot.slane %v1611, 1
    %v1620 = vrot.slane %v1612, 1
    %v1621 = vrot.slane %v1613, 1
    %v1622 = vrot.slane %v1614, 1
    %v1623 = vrot.slane %v1615, 1
    %v1624 = vsel %vm643, %v1622, %v1623
    %v1625 = vsel %vm643, %v1621, %v1622
    %v1626 = vsel %vm643, %v1620, %v1621
    %v1627 = vsel %vm643, %v1619, %v1620
    %v1628 = vsel %vm643, %v1618, %v1619
    %v1629 = vsel %vm643, %v1617, %v1618
    %v1630 = vsel %vm643, %v1616, %v1617
    %v1631 = vsel %vm643, %v1623, %v1616
    %v1632 = vadd.f32 %v1608, %v1630
    %v1633 = vadd.f32 %v1609, %v1629
    %v1634 = vadd.f32 %v1610, %v1628
    %v1635 = vadd.f32 %v1611, %v1627
    %v1636 = vadd.f32 %v1612, %v1626
    %v1637 = vadd.f32 %v1613, %v1625
    %v1638 = vadd.f32 %v1614, %v1624
    %v1639 = vadd.f32 %v1615, %v1631
    %v1640 = vrot.slane %v1632, 2
    %v1641 = vrot.slane %v1633, 2
    %v1642 = vrot.slane %v1634, 2
    %v1643 = vrot.slane %v1635, 2
    %v1644 = vrot.slane %v1636, 2
    %v1645 = vrot.slane %v1637, 2
    %v1646 = vrot.slane %v1638, 2
    %v1647 = vrot.slane %v1639, 2
    %vm1648 = vcmp.lt.s32.totalorder %v33, 6
    %v1649 = vsel %vm1648, %v1646, %v1647
    %v1650 = vsel %vm1648, %v1645, %v1646
    %v1651 = vsel %vm1648, %v1644, %v1645
    %v1652 = vsel %vm1648, %v1643, %v1644
    %v1653 = vsel %vm1648, %v1642, %v1643
    %v1654 = vsel %vm1648, %v1641, %v1642
    %v1655 = vsel %vm1648, %v1640, %v1641
    %v1656 = vsel %vm1648, %v1647, %v1640
    %v1657 = vadd.f32 %v1632, %v1655
    %v1658 = vadd.f32 %v1633, %v1654
    %v1659 = vadd.f32 %v1634, %v1653
    %v1660 = vadd.f32 %v1635, %v1652
    %v1661 = vadd.f32 %v1636, %v1651
    %v1662 = vadd.f32 %v1637, %v1650
    %v1663 = vadd.f32 %v1638, %v1649
    %v1664 = vadd.f32 %v1639, %v1656
    %v1665 = vrot.slane %v1657, 4
    %v1666 = vrot.slane %v1658, 4
    %v1667 = vrot.slane %v1659, 4
    %v1668 = vrot.slane %v1660, 4
    %v1669 = vrot.slane %v1661, 4
    %v1670 = vrot.slane %v1662, 4
    %v1671 = vrot.slane %v1663, 4
    %v1672 = vrot.slane %v1664, 4
    %vm1673 = vcmp.lt.s32.totalorder %v33, 4
    %v1674 = vsel %vm1673, %v1671, %v1672
    %v1675 = vsel %vm1673, %v1670, %v1671
    %v1676 = vsel %vm1673, %v1669, %v1670
    %v1677 = vsel %vm1673, %v1668, %v1669
    %v1678 = vsel %vm1673, %v1667, %v1668
    %v1679 = vsel %vm1673, %v1666, %v1667
    %v1680 = vsel %vm1673, %v1665, %v1666
    %v1681 = vsel %vm1673, %v1672, %v1665
    %v1682 = vadd.f32 %v1657, %v1680
    %v1683 = vadd.f32 %v1658, %v1679
    %v1684 = vadd.f32 %v1659, %v1678
    %v1685 = vadd.f32 %v1660, %v1677
    %v1686 = vadd.f32 %v1661, %v1676
    %v1687 = vadd.f32 %v1662, %v1675
    %v1688 = vadd.f32 %v1663, %v1674
    %v1689 = vadd.f32 %v1664, %v1681
    %1690 = vst.msk [vmem:[#allocation3] sm:$0xff] %vm1245, %v1682
    %1691 = vst.msk [vmem:[#allocation3 + $0x8] sm:$0xff] %vm1245, %v1683
    %1692 = vst.msk [vmem:[#allocation3 + $0x10] sm:$0xff] %vm1245, %v1684
    %1693 = vst.msk [vmem:[#allocation3 + $0x18] sm:$0xff] %vm1245, %v1685
    %1694 = vst.msk [vmem:[#allocation3 + $0x20] sm:$0xff] %vm1245, %v1686
    %1695 = vst.msk [vmem:[#allocation3 + $0x28] sm:$0xff] %vm1245, %v1687
    %1696 = vst.msk [vmem:[#allocation3 + $0x30] sm:$0xff] %vm1245, %v1688
    %1697 = vst.msk [vmem:[#allocation3 + $0x38] sm:$0xff] %vm1245, %v1689
    %v1698 = vld [vmem:[#allocation3] ss:$8 sm:$0xf]
    %v1699 = vld [vmem:[#allocation3] ss:$8 sm:$0xf0]
    %v1700 = vor.u32 %v1698, %v1699
    %v1701 = vmul.f32 %v1700, 0.125
    %v1702 = vpack.c.bf16 %v1701, %v1701
    %v1703 = vld [vmem:[#allocation4 + $0xb0] sm:$0xf]
    %v1704 = vld [vmem:[#allocation4 + $0xb4] sm:$0xf]
    %v1705 = vld [vmem:[#allocation4 + $0xb8] sm:$0xf]
    %v1706 = vld [vmem:[#allocation4 + $0xbc] sm:$0xf]
    %v1707 = vld [vmem:[#allocation4 + $0xc0] sm:$0xf]
    %v1708 = vld [vmem:[#allocation4 + $0xc4] sm:$0xf]
    %v1709 = vld [vmem:[#allocation4 + $0xc8] sm:$0xf]
    %v1710 = vld [vmem:[#allocation4 + $0xcc] sm:$0xf]
    %v1711 = vperm.slane %v31, 4
    %v1720 = vunpack.c.l.b16 %v1703
    %v1721 = vunpack.c.l.b16 %v1704
    %v1722 = vunpack.c.l.b16 %v1705
    %v1723 = vunpack.c.l.b16 %v1706
    %v1724 = vunpack.c.l.b16 %v1707
    %v1725 = vunpack.c.l.b16 %v1708
    %v1726 = vunpack.c.l.b16 %v1709
    %v1727 = vunpack.c.l.b16 %v1710
    %v1728 = vpack.c.b16 %v1721, %v1720
    %v1729 = vpack.c.b16 %v1723, %v1722
    %v1730 = vpack.c.b16 %v1725, %v1724
    %v1731 = vpack.c.b16 %v1727, %v1726
    %v1737 = vsel %vm1245, %v1702, 0
    %1739 = vmatpush.bf16.msra.mxu0 0
    %1740 = vmatpush.bf16.msra.mxu0 0
    %1741 = vmatpush.bf16.msra.mxu0 0
    %1742 = vmatpush.bf16.msra.mxu0 0
    %1743 = vmatpush.bf16.msra.mxu0 %v1731
    %1744 = vmatpush.bf16.msra.mxu0 %v1730
    %1745 = vmatpush.bf16.msra.mxu0 %v1729
    %1746 = vmatpush.bf16.msra.mxu0 %v1728
    %1747 = vmatmul.bf16.gmra.mxu0 %v1737
    %v1748 = vpop.f32.mrf.mxu0
    %v1749 = vadd.f32 %v1711, %v1748
    %v1750 = vpop.f32.mrf.mxu0
    %1751 = vdwg.mxu0
    %1752 = vst [vmem:[%s3] sm:$0xff] %v1749
    // Predicated region
    $region18: #{cnn_forward.1} parent=1 // pred_check
      _
    $region19: #{cnn_forward.1} parent=1 // pred_check_branch
      %1754 = sbr.rel (0) target = $region21
    $region20: #{cnn_forward.1} parent=1 // pred_region
      _
    $region21: #{cnn_forward.1} parent=1 // pred_fallthru
      _
    // Predicated region
    $region22: #{cnn_forward.1} parent=1 // pred_check
      _
    $region23: #{cnn_forward.1} parent=1 // pred_check_branch
      %1756 = sbr.rel (0) target = $region25
    $region24: #{cnn_forward.1} parent=1 // pred_region
      _
    $region25: #{cnn_forward.1} parent=1 // pred_fallthru
      _
    %1757 = vsyncpa [#allocation5], 1

</llo_original>
